<compile_context>
chip_gen: v7x
topology: tpu7x:2x2x1
jax: 0.10.0
libtpu: 0.0.40
codegen_flags: <defaults>
</compile_context>

<pallas_src>
import jax
import jax.numpy as jnp
from jax.experimental import pallas as pl
from jax.experimental.pallas import tpu as pltpu


# ----------------------------------------------------------------------------
# tiling helpers
# ----------------------------------------------------------------------------
def _pick_batch_tile(B, cap=8):
    """Batch rows per grid step: full B if small, else prefer a multiple of 8."""
    if B <= cap:
        return B
    if B % 8 == 0:
        return 8
    for bt in range(cap, 0, -1):        # fall back to any divisor (still correct)
        if B % bt == 0:
            return bt
    return 1


def _pick_point_tile(N, cap):
    """Largest multiple of 128 dividing N that is <= cap; ragged N -> one full tile."""
    if N <= cap:
        return N
    t = (cap // 128) * 128
    while t >= 128:
        if N % t == 0:
            return t
        t -= 128
    return N  # ragged N: single full-extent block (no pad lanes -> exact max)


# ----------------------------------------------------------------------------
# kernels
# ----------------------------------------------------------------------------
def _global_feat_kernel(bt):
    """Points-major orientation. x block (bt, Nt, C0); running max -> (bt, C2)."""

    def kernel(x_ref, w1_ref, b1_ref, w2_ref, b2_ref, g_ref):
        @pl.when(pl.program_id(1) == 0)
        def _init():                                 # first N-tile of this batch tile
            g_ref[...] = jnp.full(g_ref.shape, -jnp.inf, g_ref.dtype)

        w1 = w1_ref[...]                             # (C0, C1)
        b1 = b1_ref[...]                             # (1,  C1)
        w2 = w2_ref[...]                             # (C1, C2)
        b2 = b2_ref[...]                             # (1,  C2)

        rows = []
        for bi in range(bt):                         # static unroll, bt <= 8
            xb = x_ref[bi]                           # (Nt, C0)
            h1 = jnp.maximum(
                jnp.dot(xb, w1, preferred_element_type=jnp.float32) + b1, 0.0)
            h2 = jnp.maximum(
                jnp.dot(h1, w2, preferred_element_type=jnp.float32) + b2, 0.0)
            # sublane-axis max -> lane-dense (1, C2) row, no transpose needed
            rows.append(jnp.max(h2, axis=0, keepdims=True))
        tile_max = rows[0] if bt == 1 else jnp.concatenate(rows, axis=0)  # (bt, C2)
        g_ref[...] = jnp.maximum(g_ref[...], tile_max)

    return kernel


def _point_feat_kernel(bt):
    """Channels-first orientation. x block (bt, C0, Nt); writes h2 slab + column max."""

    def kernel(x_ref, w1_ref, b1_ref, w2_ref, b2_ref, h2_ref, g_ref):
        @pl.when(pl.program_id(1) == 0)
        def _init():
            g_ref[...] = jnp.full(g_ref.shape, -jnp.inf, g_ref.dtype)

        w1 = w1_ref[...]                             # (C1, C0)
        b1 = b1_ref[...]                             # (C1, 1)
        w2 = w2_ref[...]                             # (C2, C1)
        b2 = b2_ref[...]                             # (C2, 1)

        for bi in range(bt):                         # static unroll, bt <= 4
            xb = x_ref[bi]                           # (C0, Nt)
            h1 = jnp.maximum(
                jnp.dot(w1, xb, preferred_element_type=jnp.float32) + b1, 0.0)
            h2 = jnp.maximum(
                jnp.dot(w2, h1, preferred_element_type=jnp.float32) + b2, 0.0)
            h2_ref[bi] = h2.astype(h2_ref.dtype)     # lane-dense (C2, Nt) store
            col = jnp.max(h2, axis=-1, keepdims=True)            # (C2, 1)
            g_ref[bi] = jnp.maximum(g_ref[bi], col)  # tiny side output, resident

    return kernel


# ----------------------------------------------------------------------------
# wrapper
# ----------------------------------------------------------------------------
def pointnetfeat_forward(x, conv1_w, conv1_b, conv2_w, conv2_b,
                         *, global_feat=True, point_tile=None):
    """Fused PointNetfeat forward.

    x      : (B, dim_0, N) f32  -- PyTorch Conv1d NCW layout
    conv1_w: (dim_1, dim_0, 1) or (dim_1, dim_0);  conv1_b: (dim_1,)
    conv2_w: (dim_2, dim_1, 1) or (dim_2, dim_1);  conv2_b: (dim_2,)
    Returns (B, dim_2) if global_feat else (B, 2*dim_2, N).
    """
    B, dim_0, N = x.shape
    w1 = conv1_w.reshape(conv1_w.shape[0], dim_0)
    dim_1 = w1.shape[0]
    w2 = conv2_w.reshape(conv2_w.shape[0], dim_1)
    dim_2 = w2.shape[0]

    compiler_params = pltpu.CompilerParams(
        dimension_semantics=("parallel", "arbitrary"),   # batch || , N-tiles = reduction
        vmem_limit_bytes=32 * 1024 * 1024)

    if global_feat:
        bt = _pick_batch_tile(B, cap=8)
        nt = point_tile if (point_tile is not None and N % point_tile == 0) \
            else _pick_point_tile(N, 1024)
        grid = (B // bt, N // nt)

        # Points-major layout: channels on lanes so the global max is lane-dense.
        xt = jnp.transpose(x, (0, 2, 1))                 # (B, N, dim_0) -- tiny XLA op
        w1t = jnp.transpose(w1)                          # (dim_0, dim_1)
        w2t = jnp.transpose(w2)                          # (dim_1, dim_2)
        b1r = conv1_b.reshape(1, dim_1)
        b2r = conv2_b.reshape(1, dim_2)

        return pl.pallas_call(
            _global_feat_kernel(bt),
            out_shape=jax.ShapeDtypeStruct((B, dim_2), jnp.float32),
            grid_spec=pltpu.PrefetchScalarGridSpec(
                num_scalar_prefetch=0,
                grid=grid,
                in_specs=[
                    pl.BlockSpec((bt, nt, dim_0), lambda b, n: (b, n, 0)),
                    pl.BlockSpec((dim_0, dim_1), lambda b, n: (0, 0)),
                    pl.BlockSpec((1, dim_1), lambda b, n: (0, 0)),
                    pl.BlockSpec((dim_1, dim_2), lambda b, n: (0, 0)),
                    pl.BlockSpec((1, dim_2), lambda b, n: (0, 0)),
                ],
                # Resident across the N axis -> running-max accumulator.
                out_specs=pl.BlockSpec((bt, dim_2), lambda b, n: (b, 0)),
            ),
            compiler_params=compiler_params,
        )(xt, w1t, b1r, w2t, b2r)

    # ---- global_feat = False -------------------------------------------------
    bt = _pick_batch_tile(B, cap=4)
    # Keep the double-buffered (bt, dim_2, nt) f32 output block around <= 4 MiB.
    cap = max(128, min(1024, ((4 * 1024 * 1024) // (2 * bt * dim_2 * 4) // 128) * 128))
    nt = point_tile if (point_tile is not None and N % point_tile == 0) \
        else _pick_point_tile(N, cap)
    grid = (B // bt, N // nt)

    b1c = conv1_b.reshape(dim_1, 1)
    b2c = conv2_b.reshape(dim_2, 1)

    h2, g = pl.pallas_call(
        _point_feat_kernel(bt),
        out_shape=(jax.ShapeDtypeStruct((B, dim_2, N), jnp.float32),
                   jax.ShapeDtypeStruct((B, dim_2, 1), jnp.float32)),
        grid_spec=pltpu.PrefetchScalarGridSpec(
            num_scalar_prefetch=0,
            grid=grid,
            in_specs=[
                pl.BlockSpec((bt, dim_0, nt), lambda b, n: (b, 0, n)),
                pl.BlockSpec((dim_1, dim_0), lambda b, n: (0, 0)),
                pl.BlockSpec((dim_1, 1), lambda b, n: (0, 0)),
                pl.BlockSpec((dim_2, dim_1), lambda b, n: (0, 0)),
                pl.BlockSpec((dim_2, 1), lambda b, n: (0, 0)),
            ],
            out_specs=[
                pl.BlockSpec((bt, dim_2, nt), lambda b, n: (b, 0, n)),   # per-tile
                pl.BlockSpec((bt, dim_2, 1), lambda b, n: (b, 0, 0)),    # accumulator
            ],
        ),
        compiler_params=compiler_params,
    )(x, w1, b1c, w2, b2c)

    # g is only final after the last N-tile, so the repeat+concat cannot be fused
    # into the tiled store; do it with plain XLA broadcast/concat (per review).
    rep = jnp.broadcast_to(g, (B, dim_2, N))
    return jnp.concatenate([rep, h2], axis=1)


# ----------------------------------------------------------------------------
# pure-JAX reference mirroring the PyTorch module
# ----------------------------------------------------------------------------
def _ref_forward(x, w1, b1, w2, b2, global_feat):
    h1 = jnp.maximum(jnp.einsum('oc,bcn->bon', w1, x) + b1[None, :, None], 0.0)
    h2 = jnp.maximum(jnp.einsum('oc,bcn->bon', w2, h1) + b2[None, :, None], 0.0)
    g = jnp.max(h2, axis=2)
    if global_feat:
        return g
    rep = jnp.broadcast_to(g[:, :, None], h2.shape)
    return jnp.concatenate([rep, h2], axis=1)


if __name__ == "__main__":
    key = jax.random.PRNGKey(0)
    kx, k1, kb1, k2, kb2 = jax.random.split(key, 5)

    # Small PointNetfeat config: xyz input, 64 -> 128 channels, 256 points.
    B, dim_0, dim_1, dim_2, n_pts = 2, 3, 64, 128, 256

    x = jax.random.normal(kx, (B, dim_0, n_pts), jnp.float32)
    w1 = jax.random.normal(k1, (dim_1, dim_0, 1), jnp.float32) * 0.3   # torch Conv1d weight
    b1 = jax.random.normal(kb1, (dim_1,), jnp.float32) * 0.05
    w2 = jax.random.normal(k2, (dim_2, dim_1, 1), jnp.float32) * 0.1
    b2 = jax.random.normal(kb2, (dim_2,), jnp.float32) * 0.05

    ref_g = _ref_forward(x, w1[..., 0], b1, w2[..., 0], b2, True)
    ref_cat = _ref_forward(x, w1[..., 0], b1, w2[..., 0], b2, False)

    # global_feat=True: single N-tile and forced 128-point tiles (exercises the
    # running-max accumulator across the point axis).
    for pt in (None, 128):
        g = jax.block_until_ready(
            pointnetfeat_forward(x, w1, b1, w2, b2, global_feat=True, point_tile=pt))
        assert g.shape == (B, dim_2), g.shape
        assert jnp.allclose(g, ref_g, rtol=1e-4, atol=1e-4)

    # global_feat=False: (B, 2*dim_2, n_pts), same two tilings.
    for pt in (None, 128):
        cat = jax.block_until_ready(
            pointnetfeat_forward(x, w1, b1, w2, b2, global_feat=False, point_tile=pt))
        assert cat.shape == (B, 2 * dim_2, n_pts), cat.shape
        assert jnp.allclose(cat, ref_cat, rtol=1e-4, atol=1e-4)

    assert bool(jnp.all(jnp.isfinite(g))) and bool(jnp.all(jnp.isfinite(cat)))
    print("KERNEL_OK")
</pallas_src>

<mosaic_0001>
module attributes {stable_mosaic.version = 11 : i64} {
  func.func @kernel(%arg0: i32, %arg1: i32, %arg2: memref<2x256x3xf32, #tpu.memory_space<vmem>>, %arg3: memref<3x64xf32, #tpu.memory_space<vmem>>, %arg4: memref<1x64xf32, #tpu.memory_space<vmem>>, %arg5: memref<64x128xf32, #tpu.memory_space<vmem>>, %arg6: memref<1x128xf32, #tpu.memory_space<vmem>>, %arg7: memref<2x128xf32, #tpu.memory_space<vmem>>) attributes {dimension_semantics = [#tpu.dimension_semantics<parallel>, #tpu.dimension_semantics<arbitrary>], iteration_bounds = array<i64: 1, 1>, scalar_prefetch = 0 : i64, scratch_operands = 0 : i64, tpu.core_type = #tpu.core_type<tc>, window_params = [{transform_indices = @transform_0, window_bounds = array<i64: 2, 256, 3>}, {pipeline_mode = #tpu.pipeline_mode<synchronous>, transform_indices = @transform_1, window_bounds = array<i64: 3, 64>}, {pipeline_mode = #tpu.pipeline_mode<synchronous>, transform_indices = @transform_2, window_bounds = array<i64: 1, 64>}, {pipeline_mode = #tpu.pipeline_mode<synchronous>, transform_indices = @transform_3, window_bounds = array<i64: 64, 128>}, {pipeline_mode = #tpu.pipeline_mode<synchronous>, transform_indices = @transform_4, window_bounds = array<i64: 1, 128>}, {transform_indices = @transform_5, window_bounds = array<i64: 2, 128>}]} {
    %c0_i32 = arith.constant 0 : i32
    %0 = arith.cmpi eq, %arg1, %c0_i32 : i32
    %1 = arith.extui %0 : i1 to i32
    %c0_i32_0 = arith.constant 0 : i32
    %2 = arith.cmpi ne, %1, %c0_i32_0 : i32
    scf.if %2 {
      %cst_26 = arith.constant 0xFF800000 : f32
      %39 = vector.broadcast %cst_26 : f32 to vector<2x128xf32>
      %c0_27 = arith.constant 0 : index
      %c0_28 = arith.constant 0 : index
      %40 = vector.load %arg7[%c0_27, %c0_28] : memref<2x128xf32, #tpu.memory_space<vmem>>, vector<2x128xf32>
      tpu.vector_store %arg7[%c0_27, %c0_28], %39 {strides = array<i32>} : memref<2x128xf32, #tpu.memory_space<vmem>>, vector<2x128xf32>,
    } else {
    }
    %c0 = arith.constant 0 : index
    %c0_1 = arith.constant 0 : index
    %3 = vector.load %arg3[%c0, %c0_1] : memref<3x64xf32, #tpu.memory_space<vmem>>, vector<3x64xf32>
    %c0_2 = arith.constant 0 : index
    %c0_3 = arith.constant 0 : index
    %4 = vector.load %arg4[%c0_2, %c0_3] : memref<1x64xf32, #tpu.memory_space<vmem>>, vector<1x64xf32>
    %c0_4 = arith.constant 0 : index
    %c0_5 = arith.constant 0 : index
    %5 = vector.load %arg5[%c0_4, %c0_5] : memref<64x128xf32, #tpu.memory_space<vmem>>, vector<64x128xf32>
    %c0_6 = arith.constant 0 : index
    %c0_7 = arith.constant 0 : index
    %6 = vector.load %arg6[%c0_6, %c0_7] : memref<1x128xf32, #tpu.memory_space<vmem>>, vector<1x128xf32>
    %c0_8 = arith.constant 0 : index
    %c0_9 = arith.constant 0 : index
    %c0_10 = arith.constant 0 : index
    %7 = vector.load %arg2[%c0_8, %c0_9, %c0_10] : memref<2x256x3xf32, #tpu.memory_space<vmem>>, vector<1x256x3xf32>
    %8 = vector.shape_cast %7 : vector<1x256x3xf32> to vector<256x3xf32>
    %cst = arith.constant dense<0.000000e+00> : vector<256x64xf32>
    %9 = tpu.matmul %8, %3, %cst {dimension_numbers = #tpu.dot_dimension_numbers<[1], [0], [0], [1], [0, 0, 1, 1], [], []>} : vector<256x3xf32>, vector<3x64xf32>, vector<256x64xf32> -> vector<256x64xf32>
    %10 = vector.broadcast %4 : vector<1x64xf32> to vector<256x64xf32>
    %11 = arith.addf %9, %10 : vector<256x64xf32>
    %cst_11 = arith.constant 0.000000e+00 : f32
    %12 = vector.broadcast %cst_11 : f32 to vector<256x64xf32>
    %13 = arith.maximumf %11, %12 : vector<256x64xf32>
    %cst_12 = arith.constant dense<0.000000e+00> : vector<256x128xf32>
    %14 = tpu.matmul %13, %5, %cst_12 {dimension_numbers = #tpu.dot_dimension_numbers<[1], [0], [0], [1], [0, 0, 1, 1], [], []>} : vector<256x64xf32>, vector<64x128xf32>, vector<256x128xf32> -> vector<256x128xf32>
    %15 = vector.broadcast %6 : vector<1x128xf32> to vector<256x128xf32>
    %16 = arith.addf %14, %15 : vector<256x128xf32>
    %cst_13 = arith.constant 0.000000e+00 : f32
    %17 = vector.broadcast %cst_13 : f32 to vector<256x128xf32>
    %18 = arith.maximumf %16, %17 : vector<256x128xf32>
    %cst_14 = arith.constant dense<0xFF800000> : vector<128xf32>
    %19 = vector.multi_reduction <maximumf>, %18, %cst_14 [0] : vector<256x128xf32> to vector<128xf32>
    %20 = vector.shape_cast %19 : vector<128xf32> to vector<1x128xf32>
    %c1 = arith.constant 1 : index
    %c0_15 = arith.constant 0 : index
    %c0_16 = arith.constant 0 : index
    %21 = vector.load %arg2[%c1, %c0_15, %c0_16] : memref<2x256x3xf32, #tpu.memory_space<vmem>>, vector<1x256x3xf32>
    %22 = vector.shape_cast %21 : vector<1x256x3xf32> to vector<256x3xf32>
    %cst_17 = arith.constant dense<0.000000e+00> : vector<256x64xf32>
    %23 = tpu.matmul %22, %3, %cst_17 {dimension_numbers = #tpu.dot_dimension_numbers<[1], [0], [0], [1], [0, 0, 1, 1], [], []>} : vector<256x3xf32>, vector<3x64xf32>, vector<256x64xf32> -> vector<256x64xf32>
    %24 = vector.broadcast %4 : vector<1x64xf32> to vector<256x64xf32>
    %25 = arith.addf %23, %24 : vector<256x64xf32>
    %cst_18 = arith.constant 0.000000e+00 : f32
    %26 = vector.broadcast %cst_18 : f32 to vector<256x64xf32>
    %27 = arith.maximumf %25, %26 : vector<256x64xf32>
    %cst_19 = arith.constant dense<0.000000e+00> : vector<256x128xf32>
    %28 = tpu.matmul %27, %5, %cst_19 {dimension_numbers = #tpu.dot_dimension_numbers<[1], [0], [0], [1], [0, 0, 1, 1], [], []>} : vector<256x64xf32>, vector<64x128xf32>, vector<256x128xf32> -> vector<256x128xf32>
    %29 = vector.broadcast %6 : vector<1x128xf32> to vector<256x128xf32>
    %30 = arith.addf %28, %29 : vector<256x128xf32>
    %cst_20 = arith.constant 0.000000e+00 : f32
    %31 = vector.broadcast %cst_20 : f32 to vector<256x128xf32>
    %32 = arith.maximumf %30, %31 : vector<256x128xf32>
    %cst_21 = arith.constant dense<0xFF800000> : vector<128xf32>
    %33 = vector.multi_reduction <maximumf>, %32, %cst_21 [0] : vector<256x128xf32> to vector<128xf32>
    %34 = vector.shape_cast %33 : vector<128xf32> to vector<1x128xf32>
    %35 = tpu.concatenate %20, %34 in 0 : vector<1x128xf32>, vector<1x128xf32> -> vector<2x128xf32>
    %c0_22 = arith.constant 0 : index
    %c0_23 = arith.constant 0 : index
    %36 = vector.load %arg7[%c0_22, %c0_23] : memref<2x128xf32, #tpu.memory_space<vmem>>, vector<2x128xf32>
    %37 = arith.maximumf %36, %35 : vector<2x128xf32>
    %c0_24 = arith.constant 0 : index
    %c0_25 = arith.constant 0 : index
    %38 = vector.load %arg7[%c0_24, %c0_25] : memref<2x128xf32, #tpu.memory_space<vmem>>, vector<2x128xf32>
    tpu.vector_store %arg7[%c0_24, %c0_25], %37 {strides = array<i32>} : memref<2x128xf32, #tpu.memory_space<vmem>>, vector<2x128xf32>,
    return
  }
  func.func @transform_0(%arg0: i32, %arg1: i32) -> (i32, i32, i32) {
    %c0_i32 = arith.constant 0 : i32
    %c0_i32_0 = arith.constant 0 : i32
    return %arg0, %arg1, %c0_i32 : i32, i32, i32
  }
  func.func @transform_1(%arg0: i32, %arg1: i32) -> (i32, i32) {
    %c0_i32 = arith.constant 0 : i32
    %c0_i32_0 = arith.constant 0 : i32
    %c0_i32_1 = arith.constant 0 : i32
    return %c0_i32, %c0_i32_0 : i32, i32
  }
  func.func @transform_2(%arg0: i32, %arg1: i32) -> (i32, i32) {
    %c0_i32 = arith.constant 0 : i32
    %c0_i32_0 = arith.constant 0 : i32
    %c0_i32_1 = arith.constant 0 : i32
    return %c0_i32, %c0_i32_0 : i32, i32
  }
  func.func @transform_3(%arg0: i32, %arg1: i32) -> (i32, i32) {
    %c0_i32 = arith.constant 0 : i32
    %c0_i32_0 = arith.constant 0 : i32
    %c0_i32_1 = arith.constant 0 : i32
    return %c0_i32, %c0_i32_0 : i32, i32
  }
  func.func @transform_4(%arg0: i32, %arg1: i32) -> (i32, i32) {
    %c0_i32 = arith.constant 0 : i32
    %c0_i32_0 = arith.constant 0 : i32
    %c0_i32_1 = arith.constant 0 : i32
    return %c0_i32, %c0_i32_0 : i32, i32
  }
  func.func @transform_5(%arg0: i32, %arg1: i32) -> (i32, i32) {
    %c0_i32 = arith.constant 0 : i32
    %c0_i32_0 = arith.constant 0 : i32
    return %arg0, %c0_i32 : i32, i32
  }
}

</mosaic_0001>

<llo_original>
// kernel: tpu_custom_call.1
$region0: #{tpu_custom_call.1}
  #allocation0 [shape = 'u32[]', space=smem, size = 0x4, offset = 0x4, fixed_abs, tag = 'smem constant byte address 0x4 - core index']
  #allocation1 [shape = 'u32[144,128]{1,0:T(1,128)}', space=vmem, size = 0x12000, scoped, tag = 'internal scratch']
  %s0 = inlined_call_operand.vmem [shape: f32[2,256,3], index: 0, kind: input, shape index: {}]
  %s1 = inlined_call_operand.vmem [shape: f32[3,64], index: 1, kind: input, shape index: {}]
  %s2 = inlined_call_operand.vmem [shape: f32[1,64], index: 2, kind: input, shape index: {}]
  %s3 = inlined_call_operand.vmem [shape: f32[64,128], index: 3, kind: input, shape index: {}]
  %s4 = inlined_call_operand.vmem [shape: f32[1,128], index: 4, kind: input, shape index: {}]
  %s5 = inlined_call_operand.hbm [shape: f32[2,128], index: 5, kind: output, shape index: {}]
  %s6 = sld [smem:[#allocation0]]
  $region34: #{tpu_custom_call.1} parent=0
    _
  %s8 = ssub.s32 1, %s6
  %s9 = scalar_select 0, %s8, %s6
  $region1: #{tpu_custom_call.1} parent=0
    #allocation2 [shape = 'u8[1024]{0}', space=vmem, size = 0x400, scoped, tag = 'output window, operand 0, single buffered']
    #allocation3 [shape = 's32[1]{0}', space=sflag, size = 0x4, scoped, tag = 'scoped memory for tpu_custom_call.1']
    %10 = vsyncpa [#allocation3], 0
    // Predicated region
    $region2: #{tpu_custom_call.1} parent=1 // pred_check
      _
    $region3: #{tpu_custom_call.1} parent=1 // pred_check_branch
      %12 = sbr.rel (0) target = $region5
    $region4: #{tpu_custom_call.1} parent=1 // pred_region
      _
    $region5: #{tpu_custom_call.1} parent=1 // pred_fallthru
      _
    // Predicated region
    $region6: #{tpu_custom_call.1} parent=1 // pred_check
      _
    $region7: #{tpu_custom_call.1} parent=1 // pred_check_branch
      %14 = sbr.rel (0) target = $region9
    $region8: #{tpu_custom_call.1} parent=1 // pred_region
      _
    $region9: #{tpu_custom_call.1} parent=1 // pred_fallthru
      _
    // Predicated region
    $region10: #{tpu_custom_call.1} parent=1 // pred_check
      _
    $region11: #{tpu_custom_call.1} parent=1 // pred_check_branch
      %16 = sbr.rel (0) target = $region13
    $region12: #{tpu_custom_call.1} parent=1 // pred_region
      _
    $region13: #{tpu_custom_call.1} parent=1 // pred_fallthru
      _
    // Predicated region
    $region14: #{tpu_custom_call.1} parent=1 // pred_check
      _
    $region15: #{tpu_custom_call.1} parent=1 // pred_check_branch
      %18 = sbr.rel (0) target = $region17
    $region16: #{tpu_custom_call.1} parent=1 // pred_region
      _
    $region17: #{tpu_custom_call.1} parent=1 // pred_fallthru
      _
    // Predicated region
    $region18: #{tpu_custom_call.1} parent=1 // pred_check
      _
    $region19: #{tpu_custom_call.1} parent=1 // pred_check_branch
      %20 = sbr.rel (0) target = $region21
    $region20: #{tpu_custom_call.1} parent=1 // pred_region
      _
    $region21: #{tpu_custom_call.1} parent=1 // pred_fallthru
      _
    %p21 = scmp.eq.s32.totalorder 0, 0
    // Predicated region
    $region22: #{tpu_custom_call.1} parent=1 // pred_check
      %p22 = pneg %p21
    $region23: #{tpu_custom_call.1} parent=1 // pred_check_branch
      %24 = sbr.rel (%p22) target = $region25
    $region24: #{tpu_custom_call.1} parent=1 // pred_region
      %25 = vst [vmem:[#allocation2] sm:$0x3] -inf
    $region25: #{tpu_custom_call.1} parent=1 // pred_fallthru
      _
    %v26 = vld [vmem:[%s1] sm:$0x7]
    %v27 = vld [vmem:[%s2] sm:$0x1]
    %v28 = vld [vmem:[%s3] sm:$0xff]
    %v29 = vld [vmem:[%s3 + $0x8] sm:$0xff]
    %v30 = vld [vmem:[%s3 + $0x10] sm:$0xff]
    %v31 = vld [vmem:[%s3 + $0x18] sm:$0xff]
    %v32 = vld [vmem:[%s3 + $0x20] sm:$0xff]
    %v33 = vld [vmem:[%s3 + $0x28] sm:$0xff]
    %v34 = vld [vmem:[%s3 + $0x30] sm:$0xff]
    %v35 = vld [vmem:[%s3 + $0x38] sm:$0xff]
    %v36 = vld [vmem:[%s4] sm:$0x1]
    %v37 = vld [vmem:[%s0] sm:$0xff]
    %v38 = vld [vmem:[%s0 + $0x8] sm:$0xff]
    %v39 = vld [vmem:[%s0 + $0x10] sm:$0xff]
    %v40 = vld [vmem:[%s0 + $0x18] sm:$0xff]
    %v41 = vld [vmem:[%s0 + $0x20] sm:$0xff]
    %v42 = vld [vmem:[%s0 + $0x28] sm:$0xff]
    %v43 = vld [vmem:[%s0 + $0x30] sm:$0xff]
    %v44 = vld [vmem:[%s0 + $0x38] sm:$0xff]
    %v45 = vld [vmem:[%s0 + $0x40] sm:$0xff]
    %v46 = vld [vmem:[%s0 + $0x48] sm:$0xff]
    %v47 = vld [vmem:[%s0 + $0x50] sm:$0xff]
    %v48 = vld [vmem:[%s0 + $0x58] sm:$0xff]
    %v49 = vld [vmem:[%s0 + $0x60] sm:$0xff]
    %v50 = vld [vmem:[%s0 + $0x68] sm:$0xff]
    %v51 = vld [vmem:[%s0 + $0x70] sm:$0xff]
    %v52 = vld [vmem:[%s0 + $0x78] sm:$0xff]
    %v53 = vld [vmem:[%s0 + $0x80] sm:$0xff]
    %v54 = vld [vmem:[%s0 + $0x88] sm:$0xff]
    %v55 = vld [vmem:[%s0 + $0x90] sm:$0xff]
    %v56 = vld [vmem:[%s0 + $0x98] sm:$0xff]
    %v57 = vld [vmem:[%s0 + $0xa0] sm:$0xff]
    %v58 = vld [vmem:[%s0 + $0xa8] sm:$0xff]
    %v59 = vld [vmem:[%s0 + $0xb0] sm:$0xff]
    %v60 = vld [vmem:[%s0 + $0xb8] sm:$0xff]
    %v61 = vld [vmem:[%s0 + $0xc0] sm:$0xff]
    %v62 = vld [vmem:[%s0 + $0xc8] sm:$0xff]
    %v63 = vld [vmem:[%s0 + $0xd0] sm:$0xff]
    %v64 = vld [vmem:[%s0 + $0xd8] sm:$0xff]
    %v65 = vld [vmem:[%s0 + $0xe0] sm:$0xff]
    %v66 = vld [vmem:[%s0 + $0xe8] sm:$0xff]
    %v67 = vld [vmem:[%s0 + $0xf0] sm:$0xff]
    %v68 = vld [vmem:[%s0 + $0xf8] sm:$0xff]
    %v70 = vlaneseq
    %v71 = vshrl.u32 %v70, 7
    %v72 = vsub.s32 0, %v71
    %v73 = vrot.slane %v27, %v72
    %vm75 = vcmask 23552
    %v77 = vsel %vm75, %v37, 0
    %v80 = vsel %vm75, %v38, 0
    %v83 = vsel %vm75, %v39, 0
    %v86 = vsel %vm75, %v40, 0
    %v89 = vsel %vm75, %v41, 0
    %v92 = vsel %vm75, %v42, 0
    %v95 = vsel %vm75, %v43, 0
    %v98 = vsel %vm75, %v44, 0
    %v101 = vsel %vm75, %v45, 0
    %v104 = vsel %vm75, %v46, 0
    %v107 = vsel %vm75, %v47, 0
    %v110 = vsel %vm75, %v48, 0
    %v113 = vsel %vm75, %v49, 0
    %v116 = vsel %vm75, %v50, 0
    %v119 = vsel %vm75, %v51, 0
    %v122 = vsel %vm75, %v52, 0
    %v125 = vsel %vm75, %v53, 0
    %v128 = vsel %vm75, %v54, 0
    %v131 = vsel %vm75, %v55, 0
    %v134 = vsel %vm75, %v56, 0
    %v137 = vsel %vm75, %v57, 0
    %v140 = vsel %vm75, %v58, 0
    %v143 = vsel %vm75, %v59, 0
    %v146 = vsel %vm75, %v60, 0
    %v149 = vsel %vm75, %v61, 0
    %v152 = vsel %vm75, %v62, 0
    %v155 = vsel %vm75, %v63, 0
    %v158 = vsel %vm75, %v64, 0
    %v161 = vsel %vm75, %v65, 0
    %v164 = vsel %vm75, %v66, 0
    %v167 = vsel %vm75, %v67, 0
    %v170 = vsel %vm75, %v68, 0
    %vm172 = vcmask 1042432
    %v174 = vsel %vm172, %v26, 0
    %176 = vmatprep.subr.mxu0 0.0
    %177 = vmatpush1.msra.mxu0 %v174
    %178 = vmatprep.subr.mxu0 0.0
    %179 = vmatpush1.msra.mxu0 0.0
    %180 = vmatprep.subr.mxu0 0.0
    %181 = vmatpush1.msra.mxu0 0.0
    %182 = vmatprep.subr.mxu0 0.0
    %183 = vmatpush1.msra.mxu0 0.0
    %184 = vmatprep.subr.mxu0 0.0
    %185 = vmatpush1.msra.mxu0 0.0
    %186 = vmatprep.subr.mxu0 0.0
    %187 = vmatpush1.msra.mxu0 0.0
    %188 = vmatprep.subr.mxu0 0.0
    %189 = vmatpush1.msra.mxu0 0.0
    %190 = vmatprep.subr.mxu0 0.0
    %191 = vmatpush1.msra.mxu0 0.0
    %192 = vmatprep.subr.mxu0 0.0
    %193 = vmatpush1.msra.mxu0 0.0
    %194 = vmatprep.subr.mxu0 0.0
    %195 = vmatpush1.msra.mxu0 0.0
    %196 = vmatprep.subr.mxu0 0.0
    %197 = vmatpush1.msra.mxu0 0.0
    %198 = vmatprep.subr.mxu0 0.0
    %199 = vmatpush1.msra.mxu0 0.0
    %200 = vmatprep.subr.mxu0 0.0
    %201 = vmatpush1.msra.mxu0 0.0
    %202 = vmatprep.subr.mxu0 0.0
    %203 = vmatpush1.msra.mxu0 0.0
    %204 = vmatprep.subr.mxu0 0.0
    %205 = vmatpush1.msra.mxu0 0.0
    %206 = vmatprep.subr.mxu0 0.0
    %207 = vmatpush1.msra.mxu0 0.0
    %208 = vmatprep.subr.mxu0 0.0
    %209 = vmatpush1.msra.mxu0 0.0
    %210 = vmatprep.subr.mxu0 0.0
    %211 = vmatpush1.msra.mxu0 0.0
    %212 = vmatprep.subr.mxu0 0.0
    %213 = vmatpush1.msra.mxu0 0.0
    %214 = vmatprep.subr.mxu0 0.0
    %215 = vmatpush1.msra.mxu0 0.0
    %216 = vmatprep.subr.mxu0 0.0
    %217 = vmatpush1.msra.mxu0 0.0
    %218 = vmatprep.subr.mxu0 0.0
    %219 = vmatpush1.msra.mxu0 0.0
    %220 = vmatprep.subr.mxu0 0.0
    %221 = vmatpush1.msra.mxu0 0.0
    %222 = vmatprep.subr.mxu0 0.0
    %223 = vmatpush1.msra.mxu0 0.0
    %224 = vmatprep.subr.mxu0 0.0
    %225 = vmatpush1.msra.mxu0 0.0
    %226 = vmatprep.subr.mxu0 0.0
    %227 = vmatpush1.msra.mxu0 0.0
    %228 = vmatprep.subr.mxu0 0.0
    %229 = vmatpush1.msra.mxu0 0.0
    %230 = vmatprep.subr.mxu0 0.0
    %231 = vmatpush1.msra.mxu0 0.0
    %232 = vmatprep.subr.mxu0 0.0
    %233 = vmatpush1.msra.mxu0 0.0
    %234 = vmatprep.subr.mxu0 0.0
    %235 = vmatpush1.msra.mxu0 0.0
    %236 = vmatprep.subr.mxu0 0.0
    %237 = vmatpush1.msra.mxu0 0.0
    %238 = vmatprep.subr.mxu0 0.0
    %239 = vmatpush1.msra.mxu0 0.0
    %240 = vmatprep.mubr.f32.mxu0 0.0
    %241 = vmatmul.mubr.f32.gmra.mrb[0].mxu0 %v77
    %v242 = vpop.f32.mrb[0].mxu0
    %v243 = vadd.f32 %v73, %v242
    %v244 = vpop.f32.mrb[0].mxu0
    %245 = vmatprep.mubr.f32.mxu0 0.0
    %246 = vmatmul.mubr.f32.gmra.mrb[0].mxu0 %v80
    %v247 = vpop.f32.mrb[0].mxu0
    %v248 = vadd.f32 %v73, %v247
    %v249 = vpop.f32.mrb[0].mxu0
    %250 = vmatprep.mubr.f32.mxu0 0.0
    %251 = vmatmul.mubr.f32.gmra.mrb[0].mxu0 %v83
    %v252 = vpop.f32.mrb[0].mxu0
    %v253 = vadd.f32 %v73, %v252
    %v254 = vpop.f32.mrb[0].mxu0
    %255 = vmatprep.mubr.f32.mxu0 0.0
    %256 = vmatmul.mubr.f32.gmra.mrb[0].mxu0 %v86
    %v257 = vpop.f32.mrb[0].mxu0
    %v258 = vadd.f32 %v73, %v257
    %v259 = vpop.f32.mrb[0].mxu0
    %260 = vmatprep.mubr.f32.mxu0 0.0
    %261 = vmatmul.mubr.f32.gmra.mrb[0].mxu0 %v89
    %v262 = vpop.f32.mrb[0].mxu0
    %v263 = vadd.f32 %v73, %v262
    %v264 = vpop.f32.mrb[0].mxu0
    %265 = vmatprep.mubr.f32.mxu0 0.0
    %266 = vmatmul.mubr.f32.gmra.mrb[0].mxu0 %v92
    %v267 = vpop.f32.mrb[0].mxu0
    %v268 = vadd.f32 %v73, %v267
    %v269 = vpop.f32.mrb[0].mxu0
    %270 = vmatprep.mubr.f32.mxu0 0.0
    %271 = vmatmul.mubr.f32.gmra.mrb[0].mxu0 %v95
    %v272 = vpop.f32.mrb[0].mxu0
    %v273 = vadd.f32 %v73, %v272
    %v274 = vpop.f32.mrb[0].mxu0
    %275 = vmatprep.mubr.f32.mxu0 0.0
    %276 = vmatmul.mubr.f32.gmra.mrb[0].mxu0 %v98
    %v277 = vpop.f32.mrb[0].mxu0
    %v278 = vadd.f32 %v73, %v277
    %v279 = vpop.f32.mrb[0].mxu0
    %280 = vmatprep.mubr.f32.mxu0 0.0
    %281 = vmatmul.mubr.f32.gmra.mrb[0].mxu0 %v101
    %v282 = vpop.f32.mrb[0].mxu0
    %v283 = vadd.f32 %v73, %v282
    %v284 = vpop.f32.mrb[0].mxu0
    %285 = vmatprep.mubr.f32.mxu0 0.0
    %286 = vmatmul.mubr.f32.gmra.mrb[0].mxu0 %v104
    %v287 = vpop.f32.mrb[0].mxu0
    %v288 = vadd.f32 %v73, %v287
    %v289 = vpop.f32.mrb[0].mxu0
    %290 = vmatprep.mubr.f32.mxu0 0.0
    %291 = vmatmul.mubr.f32.gmra.mrb[0].mxu0 %v107
    %v292 = vpop.f32.mrb[0].mxu0
    %v293 = vadd.f32 %v73, %v292
    %v294 = vpop.f32.mrb[0].mxu0
    %295 = vmatprep.mubr.f32.mxu0 0.0
    %296 = vmatmul.mubr.f32.gmra.mrb[0].mxu0 %v110
    %v297 = vpop.f32.mrb[0].mxu0
    %v298 = vadd.f32 %v73, %v297
    %v299 = vpop.f32.mrb[0].mxu0
    %300 = vmatprep.mubr.f32.mxu0 0.0
    %301 = vmatmul.mubr.f32.gmra.mrb[0].mxu0 %v113
    %v302 = vpop.f32.mrb[0].mxu0
    %v303 = vadd.f32 %v73, %v302
    %v304 = vpop.f32.mrb[0].mxu0
    %305 = vmatprep.mubr.f32.mxu0 0.0
    %306 = vmatmul.mubr.f32.gmra.mrb[0].mxu0 %v116
    %v307 = vpop.f32.mrb[0].mxu0
    %v308 = vadd.f32 %v73, %v307
    %v309 = vpop.f32.mrb[0].mxu0
    %310 = vmatprep.mubr.f32.mxu0 0.0
    %311 = vmatmul.mubr.f32.gmra.mrb[0].mxu0 %v119
    %v312 = vpop.f32.mrb[0].mxu0
    %v313 = vadd.f32 %v73, %v312
    %v314 = vpop.f32.mrb[0].mxu0
    %315 = vmatprep.mubr.f32.mxu0 0.0
    %316 = vmatmul.mubr.f32.gmra.mrb[0].mxu0 %v122
    %v317 = vpop.f32.mrb[0].mxu0
    %v318 = vadd.f32 %v73, %v317
    %v319 = vpop.f32.mrb[0].mxu0
    %320 = vmatprep.mubr.f32.mxu0 0.0
    %321 = vmatmul.mubr.f32.gmra.mrb[0].mxu0 %v125
    %v322 = vpop.f32.mrb[0].mxu0
    %v323 = vadd.f32 %v73, %v322
    %v324 = vpop.f32.mrb[0].mxu0
    %325 = vmatprep.mubr.f32.mxu0 0.0
    %326 = vmatmul.mubr.f32.gmra.mrb[0].mxu0 %v128
    %v327 = vpop.f32.mrb[0].mxu0
    %v328 = vadd.f32 %v73, %v327
    %v329 = vpop.f32.mrb[0].mxu0
    %330 = vmatprep.mubr.f32.mxu0 0.0
    %331 = vmatmul.mubr.f32.gmra.mrb[0].mxu0 %v131
    %v332 = vpop.f32.mrb[0].mxu0
    %v333 = vadd.f32 %v73, %v332
    %v334 = vpop.f32.mrb[0].mxu0
    %335 = vmatprep.mubr.f32.mxu0 0.0
    %336 = vmatmul.mubr.f32.gmra.mrb[0].mxu0 %v134
    %v337 = vpop.f32.mrb[0].mxu0
    %v338 = vadd.f32 %v73, %v337
    %v339 = vpop.f32.mrb[0].mxu0
    %340 = vmatprep.mubr.f32.mxu0 0.0
    %341 = vmatmul.mubr.f32.gmra.mrb[0].mxu0 %v137
    %v342 = vpop.f32.mrb[0].mxu0
    %v343 = vadd.f32 %v73, %v342
    %v344 = vpop.f32.mrb[0].mxu0
    %345 = vmatprep.mubr.f32.mxu0 0.0
    %346 = vmatmul.mubr.f32.gmra.mrb[0].mxu0 %v140
    %v347 = vpop.f32.mrb[0].mxu0
    %v348 = vadd.f32 %v73, %v347
    %v349 = vpop.f32.mrb[0].mxu0
    %350 = vmatprep.mubr.f32.mxu0 0.0
    %351 = vmatmul.mubr.f32.gmra.mrb[0].mxu0 %v143
    %v352 = vpop.f32.mrb[0].mxu0
    %v353 = vadd.f32 %v73, %v352
    %v354 = vpop.f32.mrb[0].mxu0
    %355 = vmatprep.mubr.f32.mxu0 0.0
    %356 = vmatmul.mubr.f32.gmra.mrb[0].mxu0 %v146
    %v357 = vpop.f32.mrb[0].mxu0
    %v358 = vadd.f32 %v73, %v357
    %v359 = vpop.f32.mrb[0].mxu0
    %360 = vmatprep.mubr.f32.mxu0 0.0
    %361 = vmatmul.mubr.f32.gmra.mrb[0].mxu0 %v149
    %v362 = vpop.f32.mrb[0].mxu0
    %v363 = vadd.f32 %v73, %v362
    %v364 = vpop.f32.mrb[0].mxu0
    %365 = vmatprep.mubr.f32.mxu0 0.0
    %366 = vmatmul.mubr.f32.gmra.mrb[0].mxu0 %v152
    %v367 = vpop.f32.mrb[0].mxu0
    %v368 = vadd.f32 %v73, %v367
    %v369 = vpop.f32.mrb[0].mxu0
    %370 = vmatprep.mubr.f32.mxu0 0.0
    %371 = vmatmul.mubr.f32.gmra.mrb[0].mxu0 %v155
    %v372 = vpop.f32.mrb[0].mxu0
    %v373 = vadd.f32 %v73, %v372
    %v374 = vpop.f32.mrb[0].mxu0
    %375 = vmatprep.mubr.f32.mxu0 0.0
    %376 = vmatmul.mubr.f32.gmra.mrb[0].mxu0 %v158
    %v377 = vpop.f32.mrb[0].mxu0
    %v378 = vadd.f32 %v73, %v377
    %v379 = vpop.f32.mrb[0].mxu0
    %380 = vmatprep.mubr.f32.mxu0 0.0
    %381 = vmatmul.mubr.f32.gmra.mrb[0].mxu0 %v161
    %v382 = vpop.f32.mrb[0].mxu0
    %v383 = vadd.f32 %v73, %v382
    %v384 = vpop.f32.mrb[0].mxu0
    %385 = vmatprep.mubr.f32.mxu0 0.0
    %386 = vmatmul.mubr.f32.gmra.mrb[0].mxu0 %v164
    %v387 = vpop.f32.mrb[0].mxu0
    %v388 = vadd.f32 %v73, %v387
    %v389 = vpop.f32.mrb[0].mxu0
    %390 = vmatprep.mubr.f32.mxu0 0.0
    %391 = vmatmul.mubr.f32.gmra.mrb[0].mxu0 %v167
    %v392 = vpop.f32.mrb[0].mxu0
    %v393 = vadd.f32 %v73, %v392
    %v394 = vpop.f32.mrb[0].mxu0
    %395 = vmatprep.mubr.f32.mxu0 0.0
    %396 = vmatmul.mubr.f32.gmra.mrb[0].mxu0 %v170
    %v397 = vpop.f32.mrb[0].mxu0
    %v398 = vadd.f32 %v73, %v397
    %v399 = vpop.f32.mrb[0].mxu0
    %400 = vdwg.mxu0
    %v401 = vmax.f32 %v243, 0.0
    %v402 = vmax.f32 %v248, 0.0
    %v403 = vmax.f32 %v253, 0.0
    %v404 = vmax.f32 %v258, 0.0
    %v405 = vmax.f32 %v263, 0.0
    %v406 = vmax.f32 %v268, 0.0
    %v407 = vmax.f32 %v273, 0.0
    %v408 = vmax.f32 %v278, 0.0
    %v409 = vmax.f32 %v283, 0.0
    %v410 = vmax.f32 %v288, 0.0
    %v411 = vmax.f32 %v293, 0.0
    %v412 = vmax.f32 %v298, 0.0
    %v413 = vmax.f32 %v303, 0.0
    %v414 = vmax.f32 %v308, 0.0
    %v415 = vmax.f32 %v313, 0.0
    %v416 = vmax.f32 %v318, 0.0
    %v417 = vmax.f32 %v323, 0.0
    %v418 = vmax.f32 %v328, 0.0
    %v419 = vmax.f32 %v333, 0.0
    %v420 = vmax.f32 %v338, 0.0
    %v421 = vmax.f32 %v343, 0.0
    %v422 = vmax.f32 %v348, 0.0
    %v423 = vmax.f32 %v353, 0.0
    %v424 = vmax.f32 %v358, 0.0
    %v425 = vmax.f32 %v363, 0.0
    %v426 = vmax.f32 %v368, 0.0
    %v427 = vmax.f32 %v373, 0.0
    %v428 = vmax.f32 %v378, 0.0
    %v429 = vmax.f32 %v383, 0.0
    %v430 = vmax.f32 %v388, 0.0
    %v431 = vmax.f32 %v393, 0.0
    %v432 = vmax.f32 %v398, 0.0
    %v434 = vlaneseq
    %v435 = vshrl.u32 %v434, 7
    %v436 = vsub.s32 0, %v435
    %v437 = vrot.slane %v36, %v436
    %vm439 = vcmask 523264
    %v441 = vsel %vm439, %v401, 0
    %v444 = vsel %vm439, %v402, 0
    %v447 = vsel %vm439, %v403, 0
    %v450 = vsel %vm439, %v404, 0
    %v453 = vsel %vm439, %v405, 0
    %v456 = vsel %vm439, %v406, 0
    %v459 = vsel %vm439, %v407, 0
    %v462 = vsel %vm439, %v408, 0
    %v465 = vsel %vm439, %v409, 0
    %v468 = vsel %vm439, %v410, 0
    %v471 = vsel %vm439, %v411, 0
    %v474 = vsel %vm439, %v412, 0
    %v477 = vsel %vm439, %v413, 0
    %v480 = vsel %vm439, %v414, 0
    %v483 = vsel %vm439, %v415, 0
    %v486 = vsel %vm439, %v416, 0
    %v489 = vsel %vm439, %v417, 0
    %v492 = vsel %vm439, %v418, 0
    %v495 = vsel %vm439, %v419, 0
    %v498 = vsel %vm439, %v420, 0
    %v501 = vsel %vm439, %v421, 0
    %v504 = vsel %vm439, %v422, 0
    %v507 = vsel %vm439, %v423, 0
    %v510 = vsel %vm439, %v424, 0
    %v513 = vsel %vm439, %v425, 0
    %v516 = vsel %vm439, %v426, 0
    %v519 = vsel %vm439, %v427, 0
    %v522 = vsel %vm439, %v428, 0
    %v525 = vsel %vm439, %v429, 0
    %v528 = vsel %vm439, %v430, 0
    %v531 = vsel %vm439, %v431, 0
    %v534 = vsel %vm439, %v432, 0
    %536 = vmatprep.subr.mxu0 0.0
    %537 = vmatpush1.msra.mxu0 %v28
    %538 = vmatprep.subr.mxu0 0.0
    %539 = vmatpush1.msra.mxu0 %v29
    %540 = vmatprep.subr.mxu0 0.0
    %541 = vmatpush1.msra.mxu0 %v30
    %542 = vmatprep.subr.mxu0 0.0
    %543 = vmatpush1.msra.mxu0 %v31
    %544 = vmatprep.subr.mxu0 0.0
    %545 = vmatpush1.msra.mxu0 %v32
    %546 = vmatprep.subr.mxu0 0.0
    %547 = vmatpush1.msra.mxu0 %v33
    %548 = vmatprep.subr.mxu0 0.0
    %549 = vmatpush1.msra.mxu0 %v34
    %550 = vmatprep.subr.mxu0 0.0
    %551 = vmatpush1.msra.mxu0 %v35
    %552 = vmatprep.subr.mxu0 0.0
    %553 = vmatpush1.msra.mxu0 0.0
    %554 = vmatprep.subr.mxu0 0.0
    %555 = vmatpush1.msra.mxu0 0.0
    %556 = vmatprep.subr.mxu0 0.0
    %557 = vmatpush1.msra.mxu0 0.0
    %558 = vmatprep.subr.mxu0 0.0
    %559 = vmatpush1.msra.mxu0 0.0
    %560 = vmatprep.subr.mxu0 0.0
    %561 = vmatpush1.msra.mxu0 0.0
    %562 = vmatprep.subr.mxu0 0.0
    %563 = vmatpush1.msra.mxu0 0.0
    %564 = vmatprep.subr.mxu0 0.0
    %565 = vmatpush1.msra.mxu0 0.0
    %566 = vmatprep.subr.mxu0 0.0
    %567 = vmatpush1.msra.mxu0 0.0
    %568 = vmatprep.subr.mxu0 0.0
    %569 = vmatpush1.msra.mxu0 0.0
    %570 = vmatprep.subr.mxu0 0.0
    %571 = vmatpush1.msra.mxu0 0.0
    %572 = vmatprep.subr.mxu0 0.0
    %573 = vmatpush1.msra.mxu0 0.0
    %574 = vmatprep.subr.mxu0 0.0
    %575 = vmatpush1.msra.mxu0 0.0
    %576 = vmatprep.subr.mxu0 0.0
    %577 = vmatpush1.msra.mxu0 0.0
    %578 = vmatprep.subr.mxu0 0.0
    %579 = vmatpush1.msra.mxu0 0.0
    %580 = vmatprep.subr.mxu0 0.0
    %581 = vmatpush1.msra.mxu0 0.0
    %582 = vmatprep.subr.mxu0 0.0
    %583 = vmatpush1.msra.mxu0 0.0
    %584 = vmatprep.subr.mxu0 0.0
    %585 = vmatpush1.msra.mxu0 0.0
    %586 = vmatprep.subr.mxu0 0.0
    %587 = vmatpush1.msra.mxu0 0.0
    %588 = vmatprep.subr.mxu0 0.0
    %589 = vmatpush1.msra.mxu0 0.0
    %590 = vmatprep.subr.mxu0 0.0
    %591 = vmatpush1.msra.mxu0 0.0
    %592 = vmatprep.subr.mxu0 0.0
    %593 = vmatpush1.msra.mxu0 0.0
    %594 = vmatprep.subr.mxu0 0.0
    %595 = vmatpush1.msra.mxu0 0.0
    %596 = vmatprep.subr.mxu0 0.0
    %597 = vmatpush1.msra.mxu0 0.0
    %598 = vmatprep.subr.mxu0 0.0
    %599 = vmatpush1.msra.mxu0 0.0
    %600 = vmatprep.mubr.f32.mxu0 0.0
    %601 = vmatmul.mubr.f32.gmra.mrb[0].mxu0 %v441
    %v602 = vpop.f32.mrb[0].mxu0
    %v603 = vadd.f32 %v437, %v602
    %v604 = vpop.f32.mrb[0].mxu0
    %605 = vmatprep.mubr.f32.mxu0 0.0
    %606 = vmatmul.mubr.f32.gmra.mrb[0].mxu0 %v444
    %v607 = vpop.f32.mrb[0].mxu0
    %v608 = vadd.f32 %v437, %v607
    %v609 = vpop.f32.mrb[0].mxu0
    %610 = vmatprep.mubr.f32.mxu0 0.0
    %611 = vmatmul.mubr.f32.gmra.mrb[0].mxu0 %v447
    %v612 = vpop.f32.mrb[0].mxu0
    %v613 = vadd.f32 %v437, %v612
    %v614 = vpop.f32.mrb[0].mxu0
    %615 = vmatprep.mubr.f32.mxu0 0.0
    %616 = vmatmul.mubr.f32.gmra.mrb[0].mxu0 %v450
    %v617 = vpop.f32.mrb[0].mxu0
    %v618 = vadd.f32 %v437, %v617
    %v619 = vpop.f32.mrb[0].mxu0
    %620 = vmatprep.mubr.f32.mxu0 0.0
    %621 = vmatmul.mubr.f32.gmra.mrb[0].mxu0 %v453
    %v622 = vpop.f32.mrb[0].mxu0
    %v623 = vadd.f32 %v437, %v622
    %v624 = vpop.f32.mrb[0].mxu0
    %625 = vmatprep.mubr.f32.mxu0 0.0
    %626 = vmatmul.mubr.f32.gmra.mrb[0].mxu0 %v456
    %v627 = vpop.f32.mrb[0].mxu0
    %v628 = vadd.f32 %v437, %v627
    %v629 = vpop.f32.mrb[0].mxu0
    %630 = vmatprep.mubr.f32.mxu0 0.0
    %631 = vmatmul.mubr.f32.gmra.mrb[0].mxu0 %v459
    %v632 = vpop.f32.mrb[0].mxu0
    %v633 = vadd.f32 %v437, %v632
    %v634 = vpop.f32.mrb[0].mxu0
    %635 = vmatprep.mubr.f32.mxu0 0.0
    %636 = vmatmul.mubr.f32.gmra.mrb[0].mxu0 %v462
    %v637 = vpop.f32.mrb[0].mxu0
    %v638 = vadd.f32 %v437, %v637
    %v639 = vpop.f32.mrb[0].mxu0
    %640 = vmatprep.mubr.f32.mxu0 0.0
    %641 = vmatmul.mubr.f32.gmra.mrb[0].mxu0 %v465
    %v642 = vpop.f32.mrb[0].mxu0
    %v643 = vadd.f32 %v437, %v642
    %v644 = vpop.f32.mrb[0].mxu0
    %645 = vmatprep.mubr.f32.mxu0 0.0
    %646 = vmatmul.mubr.f32.gmra.mrb[0].mxu0 %v468
    %v647 = vpop.f32.mrb[0].mxu0
    %v648 = vadd.f32 %v437, %v647
    %v649 = vpop.f32.mrb[0].mxu0
    %650 = vmatprep.mubr.f32.mxu0 0.0
    %651 = vmatmul.mubr.f32.gmra.mrb[0].mxu0 %v471
    %v652 = vpop.f32.mrb[0].mxu0
    %v653 = vadd.f32 %v437, %v652
    %v654 = vpop.f32.mrb[0].mxu0
    %655 = vmatprep.mubr.f32.mxu0 0.0
    %656 = vmatmul.mubr.f32.gmra.mrb[0].mxu0 %v474
    %v657 = vpop.f32.mrb[0].mxu0
    %v658 = vadd.f32 %v437, %v657
    %v659 = vpop.f32.mrb[0].mxu0
    %660 = vmatprep.mubr.f32.mxu0 0.0
    %661 = vmatmul.mubr.f32.gmra.mrb[0].mxu0 %v477
    %v662 = vpop.f32.mrb[0].mxu0
    %v663 = vadd.f32 %v437, %v662
    %v664 = vpop.f32.mrb[0].mxu0
    %665 = vmatprep.mubr.f32.mxu0 0.0
    %666 = vmatmul.mubr.f32.gmra.mrb[0].mxu0 %v480
    %v667 = vpop.f32.mrb[0].mxu0
    %v668 = vadd.f32 %v437, %v667
    %v669 = vpop.f32.mrb[0].mxu0
    %670 = vmatprep.mubr.f32.mxu0 0.0
    %671 = vmatmul.mubr.f32.gmra.mrb[0].mxu0 %v483
    %v672 = vpop.f32.mrb[0].mxu0
    %v673 = vadd.f32 %v437, %v672
    %v674 = vpop.f32.mrb[0].mxu0
    %675 = vmatprep.mubr.f32.mxu0 0.0
    %676 = vmatmul.mubr.f32.gmra.mrb[0].mxu0 %v486
    %v677 = vpop.f32.mrb[0].mxu0
    %v678 = vadd.f32 %v437, %v677
    %v679 = vpop.f32.mrb[0].mxu0
    %680 = vmatprep.mubr.f32.mxu0 0.0
    %681 = vmatmul.mubr.f32.gmra.mrb[0].mxu0 %v489
    %v682 = vpop.f32.mrb[0].mxu0
    %v683 = vadd.f32 %v437, %v682
    %v684 = vpop.f32.mrb[0].mxu0
    %685 = vmatprep.mubr.f32.mxu0 0.0
    %686 = vmatmul.mubr.f32.gmra.mrb[0].mxu0 %v492
    %v687 = vpop.f32.mrb[0].mxu0
    %v688 = vadd.f32 %v437, %v687
    %v689 = vpop.f32.mrb[0].mxu0
    %690 = vmatprep.mubr.f32.mxu0 0.0
    %691 = vmatmul.mubr.f32.gmra.mrb[0].mxu0 %v495
    %v692 = vpop.f32.mrb[0].mxu0
    %v693 = vadd.f32 %v437, %v692
    %v694 = vpop.f32.mrb[0].mxu0
    %695 = vmatprep.mubr.f32.mxu0 0.0
    %696 = vmatmul.mubr.f32.gmra.mrb[0].mxu0 %v498
    %v697 = vpop.f32.mrb[0].mxu0
    %v698 = vadd.f32 %v437, %v697
    %v699 = vpop.f32.mrb[0].mxu0
    %700 = vmatprep.mubr.f32.mxu0 0.0
    %701 = vmatmul.mubr.f32.gmra.mrb[0].mxu0 %v501
    %v702 = vpop.f32.mrb[0].mxu0
    %v703 = vadd.f32 %v437, %v702
    %v704 = vpop.f32.mrb[0].mxu0
    %705 = vmatprep.mubr.f32.mxu0 0.0
    %706 = vmatmul.mubr.f32.gmra.mrb[0].mxu0 %v504
    %v707 = vpop.f32.mrb[0].mxu0
    %v708 = vadd.f32 %v437, %v707
    %v709 = vpop.f32.mrb[0].mxu0
    %710 = vmatprep.mubr.f32.mxu0 0.0
    %711 = vmatmul.mubr.f32.gmra.mrb[0].mxu0 %v507
    %v712 = vpop.f32.mrb[0].mxu0
    %v713 = vadd.f32 %v437, %v712
    %v714 = vpop.f32.mrb[0].mxu0
    %715 = vmatprep.mubr.f32.mxu0 0.0
    %716 = vmatmul.mubr.f32.gmra.mrb[0].mxu0 %v510
    %v717 = vpop.f32.mrb[0].mxu0
    %v718 = vadd.f32 %v437, %v717
    %v719 = vpop.f32.mrb[0].mxu0
    %720 = vmatprep.mubr.f32.mxu0 0.0
    %721 = vmatmul.mubr.f32.gmra.mrb[0].mxu0 %v513
    %v722 = vpop.f32.mrb[0].mxu0
    %v723 = vadd.f32 %v437, %v722
    %v724 = vpop.f32.mrb[0].mxu0
    %725 = vmatprep.mubr.f32.mxu0 0.0
    %726 = vmatmul.mubr.f32.gmra.mrb[0].mxu0 %v516
    %v727 = vpop.f32.mrb[0].mxu0
    %v728 = vadd.f32 %v437, %v727
    %v729 = vpop.f32.mrb[0].mxu0
    %730 = vmatprep.mubr.f32.mxu0 0.0
    %731 = vmatmul.mubr.f32.gmra.mrb[0].mxu0 %v519
    %v732 = vpop.f32.mrb[0].mxu0
    %v733 = vadd.f32 %v437, %v732
    %v734 = vpop.f32.mrb[0].mxu0
    %735 = vmatprep.mubr.f32.mxu0 0.0
    %736 = vmatmul.mubr.f32.gmra.mrb[0].mxu0 %v522
    %v737 = vpop.f32.mrb[0].mxu0
    %v738 = vadd.f32 %v437, %v737
    %v739 = vpop.f32.mrb[0].mxu0
    %740 = vmatprep.mubr.f32.mxu0 0.0
    %741 = vmatmul.mubr.f32.gmra.mrb[0].mxu0 %v525
    %v742 = vpop.f32.mrb[0].mxu0
    %v743 = vadd.f32 %v437, %v742
    %v744 = vpop.f32.mrb[0].mxu0
    %745 = vmatprep.mubr.f32.mxu0 0.0
    %746 = vmatmul.mubr.f32.gmra.mrb[0].mxu0 %v528
    %v747 = vpop.f32.mrb[0].mxu0
    %v748 = vadd.f32 %v437, %v747
    %v749 = vpop.f32.mrb[0].mxu0
    %750 = vmatprep.mubr.f32.mxu0 0.0
    %751 = vmatmul.mubr.f32.gmra.mrb[0].mxu0 %v531
    %v752 = vpop.f32.mrb[0].mxu0
    %v753 = vadd.f32 %v437, %v752
    %v754 = vpop.f32.mrb[0].mxu0
    %755 = vmatprep.mubr.f32.mxu0 0.0
    %756 = vmatmul.mubr.f32.gmra.mrb[0].mxu0 %v534
    %v757 = vpop.f32.mrb[0].mxu0
    %v758 = vadd.f32 %v437, %v757
    %v759 = vpop.f32.mrb[0].mxu0
    %760 = vdwg.mxu0
    %v761 = vmax.f32 %v603, 0.0
    %v762 = vmax.f32 %v608, 0.0
    %v763 = vmax.f32 %v613, 0.0
    %v764 = vmax.f32 %v618, 0.0
    %v765 = vmax.f32 %v623, 0.0
    %v766 = vmax.f32 %v628, 0.0
    %v767 = vmax.f32 %v633, 0.0
    %v768 = vmax.f32 %v638, 0.0
    %v769 = vmax.f32 %v643, 0.0
    %v770 = vmax.f32 %v648, 0.0
    %v771 = vmax.f32 %v653, 0.0
    %v772 = vmax.f32 %v658, 0.0
    %v773 = vmax.f32 %v663, 0.0
    %v774 = vmax.f32 %v668, 0.0
    %v775 = vmax.f32 %v673, 0.0
    %v776 = vmax.f32 %v678, 0.0
    %v777 = vmax.f32 %v683, 0.0
    %v778 = vmax.f32 %v688, 0.0
    %v779 = vmax.f32 %v693, 0.0
    %v780 = vmax.f32 %v698, 0.0
    %v781 = vmax.f32 %v703, 0.0
    %v782 = vmax.f32 %v708, 0.0
    %v783 = vmax.f32 %v713, 0.0
    %v784 = vmax.f32 %v718, 0.0
    %v785 = vmax.f32 %v723, 0.0
    %v786 = vmax.f32 %v728, 0.0
    %v787 = vmax.f32 %v733, 0.0
    %v788 = vmax.f32 %v738, 0.0
    %v789 = vmax.f32 %v743, 0.0
    %v790 = vmax.f32 %v748, 0.0
    %v791 = vmax.f32 %v753, 0.0
    %v792 = vmax.f32 %v758, 0.0
    %v793 = vmax.f32 %v761, %v765
    %v794 = vmax.f32 %v762, %v766
    %v795 = vmax.f32 %v763, %v767
    %v796 = vmax.f32 %v764, %v768
    %v797 = vmax.f32 %v793, %v769
    %v798 = vmax.f32 %v794, %v770
    %v799 = vmax.f32 %v795, %v771
    %v800 = vmax.f32 %v796, %v772
    %v801 = vmax.f32 %v797, %v773
    %v802 = vmax.f32 %v798, %v774
    %v803 = vmax.f32 %v799, %v775
    %v804 = vmax.f32 %v800, %v776
    %v805 = vmax.f32 %v801, %v777
    %v806 = vmax.f32 %v802, %v778
    %v807 = vmax.f32 %v803, %v779
    %v808 = vmax.f32 %v804, %v780
    %v809 = vmax.f32 %v805, %v781
    %v810 = vmax.f32 %v806, %v782
    %v811 = vmax.f32 %v807, %v783
    %v812 = vmax.f32 %v808, %v784
    %v813 = vmax.f32 %v809, %v785
    %v814 = vmax.f32 %v810, %v786
    %v815 = vmax.f32 %v811, %v787
    %v816 = vmax.f32 %v812, %v788
    %v817 = vmax.f32 %v813, %v789
    %v818 = vmax.f32 %v814, %v790
    %v819 = vmax.f32 %v815, %v791
    %v820 = vmax.f32 %v816, %v792
    %v821 = vmax.f32 %v817, %v818
    %v822 = vmax.f32 %v819, %v820
    %v823 = vmax.f32 %v821, %v822
    %v824 = vrot.slane %v823, 4
    %v825 = vmax.f32 %v823, %v824
    %v826 = vrot.slane %v825, 2
    %v827 = vmax.f32 %v825, %v826
    %v828 = vrot.slane %v827, 1
    %v829 = vmax.f32 %v827, %v828
    %s830 = scalar_lea.vmem %s0, 256
    %v831 = vld [vmem:[%s830] sm:$0xff]
    %v832 = vld [vmem:[%s830 + $0x8] sm:$0xff]
    %v833 = vld [vmem:[%s830 + $0x10] sm:$0xff]
    %v834 = vld [vmem:[%s830 + $0x18] sm:$0xff]
    %v835 = vld [vmem:[%s830 + $0x20] sm:$0xff]
    %v836 = vld [vmem:[%s830 + $0x28] sm:$0xff]
    %v837 = vld [vmem:[%s830 + $0x30] sm:$0xff]
    %v838 = vld [vmem:[%s830 + $0x38] sm:$0xff]
    %v839 = vld [vmem:[%s830 + $0x40] sm:$0xff]
    %v840 = vld [vmem:[%s830 + $0x48] sm:$0xff]
    %v841 = vld [vmem:[%s830 + $0x50] sm:$0xff]
    %v842 = vld [vmem:[%s830 + $0x58] sm:$0xff]
    %v843 = vld [vmem:[%s830 + $0x60] sm:$0xff]
    %v844 = vld [vmem:[%s830 + $0x68] sm:$0xff]
    %v845 = vld [vmem:[%s830 + $0x70] sm:$0xff]
    %v846 = vld [vmem:[%s830 + $0x78] sm:$0xff]
    %v847 = vld [vmem:[%s830 + $0x80] sm:$0xff]
    %v848 = vld [vmem:[%s830 + $0x88] sm:$0xff]
    %v849 = vld [vmem:[%s830 + $0x90] sm:$0xff]
    %v850 = vld [vmem:[%s830 + $0x98] sm:$0xff]
    %v851 = vld [vmem:[%s830 + $0xa0] sm:$0xff]
    %v852 = vld [vmem:[%s830 + $0xa8] sm:$0xff]
    %v853 = vld [vmem:[%s830 + $0xb0] sm:$0xff]
    %v854 = vld [vmem:[%s830 + $0xb8] sm:$0xff]
    %v855 = vld [vmem:[%s830 + $0xc0] sm:$0xff]
    %v856 = vld [vmem:[%s830 + $0xc8] sm:$0xff]
    %v857 = vld [vmem:[%s830 + $0xd0] sm:$0xff]
    %v858 = vld [vmem:[%s830 + $0xd8] sm:$0xff]
    %v859 = vld [vmem:[%s830 + $0xe0] sm:$0xff]
    %v860 = vld [vmem:[%s830 + $0xe8] sm:$0xff]
    %v861 = vld [vmem:[%s830 + $0xf0] sm:$0xff]
    %v862 = vld [vmem:[%s830 + $0xf8] sm:$0xff]
    %v864 = vsel %vm75, %v831, 0
    %v867 = vsel %vm75, %v832, 0
    %v870 = vsel %vm75, %v833, 0
    %v873 = vsel %vm75, %v834, 0
    %v876 = vsel %vm75, %v835, 0
    %v879 = vsel %vm75, %v836, 0
    %v882 = vsel %vm75, %v837, 0
    %v885 = vsel %vm75, %v838, 0
    %v888 = vsel %vm75, %v839, 0
    %v891 = vsel %vm75, %v840, 0
    %v894 = vsel %vm75, %v841, 0
    %v897 = vsel %vm75, %v842, 0
    %v900 = vsel %vm75, %v843, 0
    %v903 = vsel %vm75, %v844, 0
    %v906 = vsel %vm75, %v845, 0
    %v909 = vsel %vm75, %v846, 0
    %v912 = vsel %vm75, %v847, 0
    %v915 = vsel %vm75, %v848, 0
    %v918 = vsel %vm75, %v849, 0
    %v921 = vsel %vm75, %v850, 0
    %v924 = vsel %vm75, %v851, 0
    %v927 = vsel %vm75, %v852, 0
    %v930 = vsel %vm75, %v853, 0
    %v933 = vsel %vm75, %v854, 0
    %v936 = vsel %vm75, %v855, 0
    %v939 = vsel %vm75, %v856, 0
    %v942 = vsel %vm75, %v857, 0
    %v945 = vsel %vm75, %v858, 0
    %v948 = vsel %vm75, %v859, 0
    %v951 = vsel %vm75, %v860, 0
    %v954 = vsel %vm75, %v861, 0
    %v957 = vsel %vm75, %v862, 0
    %959 = vmatprep.subr.mxu0 0.0
    %960 = vmatpush1.msra.mxu0 %v174
    %961 = vmatprep.subr.mxu0 0.0
    %962 = vmatpush1.msra.mxu0 0.0
    %963 = vmatprep.subr.mxu0 0.0
    %964 = vmatpush1.msra.mxu0 0.0
    %965 = vmatprep.subr.mxu0 0.0
    %966 = vmatpush1.msra.mxu0 0.0
    %967 = vmatprep.subr.mxu0 0.0
    %968 = vmatpush1.msra.mxu0 0.0
    %969 = vmatprep.subr.mxu0 0.0
    %970 = vmatpush1.msra.mxu0 0.0
    %971 = vmatprep.subr.mxu0 0.0
    %972 = vmatpush1.msra.mxu0 0.0
    %973 = vmatprep.subr.mxu0 0.0
    %974 = vmatpush1.msra.mxu0 0.0
    %975 = vmatprep.subr.mxu0 0.0
    %976 = vmatpush1.msra.mxu0 0.0
    %977 = vmatprep.subr.mxu0 0.0
    %978 = vmatpush1.msra.mxu0 0.0
    %979 = vmatprep.subr.mxu0 0.0
    %980 = vmatpush1.msra.mxu0 0.0
    %981 = vmatprep.subr.mxu0 0.0
    %982 = vmatpush1.msra.mxu0 0.0
    %983 = vmatprep.subr.mxu0 0.0
    %984 = vmatpush1.msra.mxu0 0.0
    %985 = vmatprep.subr.mxu0 0.0
    %986 = vmatpush1.msra.mxu0 0.0
    %987 = vmatprep.subr.mxu0 0.0
    %988 = vmatpush1.msra.mxu0 0.0
    %989 = vmatprep.subr.mxu0 0.0
    %990 = vmatpush1.msra.mxu0 0.0
    %991 = vmatprep.subr.mxu0 0.0
    %992 = vmatpush1.msra.mxu0 0.0
    %993 = vmatprep.subr.mxu0 0.0
    %994 = vmatpush1.msra.mxu0 0.0
    %995 = vmatprep.subr.mxu0 0.0
    %996 = vmatpush1.msra.mxu0 0.0
    %997 = vmatprep.subr.mxu0 0.0
    %998 = vmatpush1.msra.mxu0 0.0
    %999 = vmatprep.subr.mxu0 0.0
    %1000 = vmatpush1.msra.mxu0 0.0
    %1001 = vmatprep.subr.mxu0 0.0
    %1002 = vmatpush1.msra.mxu0 0.0
    %1003 = vmatprep.subr.mxu0 0.0
    %1004 = vmatpush1.msra.mxu0 0.0
    %1005 = vmatprep.subr.mxu0 0.0
    %1006 = vmatpush1.msra.mxu0 0.0
    %1007 = vmatprep.subr.mxu0 0.0
    %1008 = vmatpush1.msra.mxu0 0.0
    %1009 = vmatprep.subr.mxu0 0.0
    %1010 = vmatpush1.msra.mxu0 0.0
    %1011 = vmatprep.subr.mxu0 0.0
    %1012 = vmatpush1.msra.mxu0 0.0
    %1013 = vmatprep.subr.mxu0 0.0
    %1014 = vmatpush1.msra.mxu0 0.0
    %1015 = vmatprep.subr.mxu0 0.0
    %1016 = vmatpush1.msra.mxu0 0.0
    %1017 = vmatprep.subr.mxu0 0.0
    %1018 = vmatpush1.msra.mxu0 0.0
    %1019 = vmatprep.subr.mxu0 0.0
    %1020 = vmatpush1.msra.mxu0 0.0
    %1021 = vmatprep.subr.mxu0 0.0
    %1022 = vmatpush1.msra.mxu0 0.0
    %1023 = vmatprep.mubr.f32.mxu0 0.0
    %1024 = vmatmul.mubr.f32.gmra.mrb[0].mxu0 %v864
    %v1025 = vpop.f32.mrb[0].mxu0
    %v1026 = vadd.f32 %v73, %v1025
    %v1027 = vpop.f32.mrb[0].mxu0
    %1028 = vmatprep.mubr.f32.mxu0 0.0
    %1029 = vmatmul.mubr.f32.gmra.mrb[0].mxu0 %v867
    %v1030 = vpop.f32.mrb[0].mxu0
    %v1031 = vadd.f32 %v73, %v1030
    %v1032 = vpop.f32.mrb[0].mxu0
    %1033 = vmatprep.mubr.f32.mxu0 0.0
    %1034 = vmatmul.mubr.f32.gmra.mrb[0].mxu0 %v870
    %v1035 = vpop.f32.mrb[0].mxu0
    %v1036 = vadd.f32 %v73, %v1035
    %v1037 = vpop.f32.mrb[0].mxu0
    %1038 = vmatprep.mubr.f32.mxu0 0.0
    %1039 = vmatmul.mubr.f32.gmra.mrb[0].mxu0 %v873
    %v1040 = vpop.f32.mrb[0].mxu0
    %v1041 = vadd.f32 %v73, %v1040
    %v1042 = vpop.f32.mrb[0].mxu0
    %1043 = vmatprep.mubr.f32.mxu0 0.0
    %1044 = vmatmul.mubr.f32.gmra.mrb[0].mxu0 %v876
    %v1045 = vpop.f32.mrb[0].mxu0
    %v1046 = vadd.f32 %v73, %v1045
    %v1047 = vpop.f32.mrb[0].mxu0
    %1048 = vmatprep.mubr.f32.mxu0 0.0
    %1049 = vmatmul.mubr.f32.gmra.mrb[0].mxu0 %v879
    %v1050 = vpop.f32.mrb[0].mxu0
    %v1051 = vadd.f32 %v73, %v1050
    %v1052 = vpop.f32.mrb[0].mxu0
    %1053 = vmatprep.mubr.f32.mxu0 0.0
    %1054 = vmatmul.mubr.f32.gmra.mrb[0].mxu0 %v882
    %v1055 = vpop.f32.mrb[0].mxu0
    %v1056 = vadd.f32 %v73, %v1055
    %v1057 = vpop.f32.mrb[0].mxu0
    %1058 = vmatprep.mubr.f32.mxu0 0.0
    %1059 = vmatmul.mubr.f32.gmra.mrb[0].mxu0 %v885
    %v1060 = vpop.f32.mrb[0].mxu0
    %v1061 = vadd.f32 %v73, %v1060
    %v1062 = vpop.f32.mrb[0].mxu0
    %1063 = vmatprep.mubr.f32.mxu0 0.0
    %1064 = vmatmul.mubr.f32.gmra.mrb[0].mxu0 %v888
    %v1065 = vpop.f32.mrb[0].mxu0
    %v1066 = vadd.f32 %v73, %v1065
    %v1067 = vpop.f32.mrb[0].mxu0
    %1068 = vmatprep.mubr.f32.mxu0 0.0
    %1069 = vmatmul.mubr.f32.gmra.mrb[0].mxu0 %v891
    %v1070 = vpop.f32.mrb[0].mxu0
    %v1071 = vadd.f32 %v73, %v1070
    %v1072 = vpop.f32.mrb[0].mxu0
    %1073 = vmatprep.mubr.f32.mxu0 0.0
    %1074 = vmatmul.mubr.f32.gmra.mrb[0].mxu0 %v894
    %v1075 = vpop.f32.mrb[0].mxu0
    %v1076 = vadd.f32 %v73, %v1075
    %v1077 = vpop.f32.mrb[0].mxu0
    %1078 = vmatprep.mubr.f32.mxu0 0.0
    %1079 = vmatmul.mubr.f32.gmra.mrb[0].mxu0 %v897
    %v1080 = vpop.f32.mrb[0].mxu0
    %v1081 = vadd.f32 %v73, %v1080
    %v1082 = vpop.f32.mrb[0].mxu0
    %1083 = vmatprep.mubr.f32.mxu0 0.0
    %1084 = vmatmul.mubr.f32.gmra.mrb[0].mxu0 %v900
    %v1085 = vpop.f32.mrb[0].mxu0
    %v1086 = vadd.f32 %v73, %v1085
    %v1087 = vpop.f32.mrb[0].mxu0
    %1088 = vmatprep.mubr.f32.mxu0 0.0
    %1089 = vmatmul.mubr.f32.gmra.mrb[0].mxu0 %v903
    %v1090 = vpop.f32.mrb[0].mxu0
    %v1091 = vadd.f32 %v73, %v1090
    %v1092 = vpop.f32.mrb[0].mxu0
    %1093 = vmatprep.mubr.f32.mxu0 0.0
    %1094 = vmatmul.mubr.f32.gmra.mrb[0].mxu0 %v906
    %v1095 = vpop.f32.mrb[0].mxu0
    %v1096 = vadd.f32 %v73, %v1095
    %v1097 = vpop.f32.mrb[0].mxu0
    %1098 = vmatprep.mubr.f32.mxu0 0.0
    %1099 = vmatmul.mubr.f32.gmra.mrb[0].mxu0 %v909
    %v1100 = vpop.f32.mrb[0].mxu0
    %v1101 = vadd.f32 %v73, %v1100
    %v1102 = vpop.f32.mrb[0].mxu0
    %1103 = vmatprep.mubr.f32.mxu0 0.0
    %1104 = vmatmul.mubr.f32.gmra.mrb[0].mxu0 %v912
    %v1105 = vpop.f32.mrb[0].mxu0
    %v1106 = vadd.f32 %v73, %v1105
    %v1107 = vpop.f32.mrb[0].mxu0
    %1108 = vmatprep.mubr.f32.mxu0 0.0
    %1109 = vmatmul.mubr.f32.gmra.mrb[0].mxu0 %v915
    %v1110 = vpop.f32.mrb[0].mxu0
    %v1111 = vadd.f32 %v73, %v1110
    %v1112 = vpop.f32.mrb[0].mxu0
    %1113 = vmatprep.mubr.f32.mxu0 0.0
    %1114 = vmatmul.mubr.f32.gmra.mrb[0].mxu0 %v918
    %v1115 = vpop.f32.mrb[0].mxu0
    %v1116 = vadd.f32 %v73, %v1115
    %v1117 = vpop.f32.mrb[0].mxu0
    %1118 = vmatprep.mubr.f32.mxu0 0.0
    %1119 = vmatmul.mubr.f32.gmra.mrb[0].mxu0 %v921
    %v1120 = vpop.f32.mrb[0].mxu0
    %v1121 = vadd.f32 %v73, %v1120
    %v1122 = vpop.f32.mrb[0].mxu0
    %1123 = vmatprep.mubr.f32.mxu0 0.0
    %1124 = vmatmul.mubr.f32.gmra.mrb[0].mxu0 %v924
    %v1125 = vpop.f32.mrb[0].mxu0
    %v1126 = vadd.f32 %v73, %v1125
    %v1127 = vpop.f32.mrb[0].mxu0
    %1128 = vmatprep.mubr.f32.mxu0 0.0
    %1129 = vmatmul.mubr.f32.gmra.mrb[0].mxu0 %v927
    %v1130 = vpop.f32.mrb[0].mxu0
    %v1131 = vadd.f32 %v73, %v1130
    %v1132 = vpop.f32.mrb[0].mxu0
    %1133 = vmatprep.mubr.f32.mxu0 0.0
    %1134 = vmatmul.mubr.f32.gmra.mrb[0].mxu0 %v930
    %v1135 = vpop.f32.mrb[0].mxu0
    %v1136 = vadd.f32 %v73, %v1135
    %v1137 = vpop.f32.mrb[0].mxu0
    %1138 = vmatprep.mubr.f32.mxu0 0.0
    %1139 = vmatmul.mubr.f32.gmra.mrb[0].mxu0 %v933
    %v1140 = vpop.f32.mrb[0].mxu0
    %v1141 = vadd.f32 %v73, %v1140
    %v1142 = vpop.f32.mrb[0].mxu0
    %1143 = vmatprep.mubr.f32.mxu0 0.0
    %1144 = vmatmul.mubr.f32.gmra.mrb[0].mxu0 %v936
    %v1145 = vpop.f32.mrb[0].mxu0
    %v1146 = vadd.f32 %v73, %v1145
    %v1147 = vpop.f32.mrb[0].mxu0
    %1148 = vmatprep.mubr.f32.mxu0 0.0
    %1149 = vmatmul.mubr.f32.gmra.mrb[0].mxu0 %v939
    %v1150 = vpop.f32.mrb[0].mxu0
    %v1151 = vadd.f32 %v73, %v1150
    %v1152 = vpop.f32.mrb[0].mxu0
    %1153 = vmatprep.mubr.f32.mxu0 0.0
    %1154 = vmatmul.mubr.f32.gmra.mrb[0].mxu0 %v942
    %v1155 = vpop.f32.mrb[0].mxu0
    %v1156 = vadd.f32 %v73, %v1155
    %v1157 = vpop.f32.mrb[0].mxu0
    %1158 = vmatprep.mubr.f32.mxu0 0.0
    %1159 = vmatmul.mubr.f32.gmra.mrb[0].mxu0 %v945
    %v1160 = vpop.f32.mrb[0].mxu0
    %v1161 = vadd.f32 %v73, %v1160
    %v1162 = vpop.f32.mrb[0].mxu0
    %1163 = vmatprep.mubr.f32.mxu0 0.0
    %1164 = vmatmul.mubr.f32.gmra.mrb[0].mxu0 %v948
    %v1165 = vpop.f32.mrb[0].mxu0
    %v1166 = vadd.f32 %v73, %v1165
    %v1167 = vpop.f32.mrb[0].mxu0
    %1168 = vmatprep.mubr.f32.mxu0 0.0
    %1169 = vmatmul.mubr.f32.gmra.mrb[0].mxu0 %v951
    %v1170 = vpop.f32.mrb[0].mxu0
    %v1171 = vadd.f32 %v73, %v1170
    %v1172 = vpop.f32.mrb[0].mxu0
    %1173 = vmatprep.mubr.f32.mxu0 0.0
    %1174 = vmatmul.mubr.f32.gmra.mrb[0].mxu0 %v954
    %v1175 = vpop.f32.mrb[0].mxu0
    %v1176 = vadd.f32 %v73, %v1175
    %v1177 = vpop.f32.mrb[0].mxu0
    %1178 = vmatprep.mubr.f32.mxu0 0.0
    %1179 = vmatmul.mubr.f32.gmra.mrb[0].mxu0 %v957
    %v1180 = vpop.f32.mrb[0].mxu0
    %v1181 = vadd.f32 %v73, %v1180
    %v1182 = vpop.f32.mrb[0].mxu0
    %1183 = vdwg.mxu0
    %v1184 = vmax.f32 %v1026, 0.0
    %v1185 = vmax.f32 %v1031, 0.0
    %v1186 = vmax.f32 %v1036, 0.0
    %v1187 = vmax.f32 %v1041, 0.0
    %v1188 = vmax.f32 %v1046, 0.0
    %v1189 = vmax.f32 %v1051, 0.0
    %v1190 = vmax.f32 %v1056, 0.0
    %v1191 = vmax.f32 %v1061, 0.0
    %v1192 = vmax.f32 %v1066, 0.0
    %v1193 = vmax.f32 %v1071, 0.0
    %v1194 = vmax.f32 %v1076, 0.0
    %v1195 = vmax.f32 %v1081, 0.0
    %v1196 = vmax.f32 %v1086, 0.0
    %v1197 = vmax.f32 %v1091, 0.0
    %v1198 = vmax.f32 %v1096, 0.0
    %v1199 = vmax.f32 %v1101, 0.0
    %v1200 = vmax.f32 %v1106, 0.0
    %v1201 = vmax.f32 %v1111, 0.0
    %v1202 = vmax.f32 %v1116, 0.0
    %v1203 = vmax.f32 %v1121, 0.0
    %v1204 = vmax.f32 %v1126, 0.0
    %v1205 = vmax.f32 %v1131, 0.0
    %v1206 = vmax.f32 %v1136, 0.0
    %v1207 = vmax.f32 %v1141, 0.0
    %v1208 = vmax.f32 %v1146, 0.0
    %v1209 = vmax.f32 %v1151, 0.0
    %v1210 = vmax.f32 %v1156, 0.0
    %v1211 = vmax.f32 %v1161, 0.0
    %v1212 = vmax.f32 %v1166, 0.0
    %v1213 = vmax.f32 %v1171, 0.0
    %v1214 = vmax.f32 %v1176, 0.0
    %v1215 = vmax.f32 %v1181, 0.0
    %v1217 = vsel %vm439, %v1184, 0
    %v1220 = vsel %vm439, %v1185, 0
    %v1223 = vsel %vm439, %v1186, 0
    %v1226 = vsel %vm439, %v1187, 0
    %v1229 = vsel %vm439, %v1188, 0
    %v1232 = vsel %vm439, %v1189, 0
    %v1235 = vsel %vm439, %v1190, 0
    %v1238 = vsel %vm439, %v1191, 0
    %v1241 = vsel %vm439, %v1192, 0
    %v1244 = vsel %vm439, %v1193, 0
    %v1247 = vsel %vm439, %v1194, 0
    %v1250 = vsel %vm439, %v1195, 0
    %v1253 = vsel %vm439, %v1196, 0
    %v1256 = vsel %vm439, %v1197, 0
    %v1259 = vsel %vm439, %v1198, 0
    %v1262 = vsel %vm439, %v1199, 0
    %v1265 = vsel %vm439, %v1200, 0
    %v1268 = vsel %vm439, %v1201, 0
    %v1271 = vsel %vm439, %v1202, 0
    %v1274 = vsel %vm439, %v1203, 0
    %v1277 = vsel %vm439, %v1204, 0
    %v1280 = vsel %vm439, %v1205, 0
    %v1283 = vsel %vm439, %v1206, 0
    %v1286 = vsel %vm439, %v1207, 0
    %v1289 = vsel %vm439, %v1208, 0
    %v1292 = vsel %vm439, %v1209, 0
    %v1295 = vsel %vm439, %v1210, 0
    %v1298 = vsel %vm439, %v1211, 0
    %v1301 = vsel %vm439, %v1212, 0
    %v1304 = vsel %vm439, %v1213, 0
    %v1307 = vsel %vm439, %v1214, 0
    %v1310 = vsel %vm439, %v1215, 0
    %1312 = vmatprep.subr.mxu0 0.0
    %1313 = vmatpush1.msra.mxu0 %v28
    %1314 = vmatprep.subr.mxu0 0.0
    %1315 = vmatpush1.msra.mxu0 %v29
    %1316 = vmatprep.subr.mxu0 0.0
    %1317 = vmatpush1.msra.mxu0 %v30
    %1318 = vmatprep.subr.mxu0 0.0
    %1319 = vmatpush1.msra.mxu0 %v31
    %1320 = vmatprep.subr.mxu0 0.0
    %1321 = vmatpush1.msra.mxu0 %v32
    %1322 = vmatprep.subr.mxu0 0.0
    %1323 = vmatpush1.msra.mxu0 %v33
    %1324 = vmatprep.subr.mxu0 0.0
    %1325 = vmatpush1.msra.mxu0 %v34
    %1326 = vmatprep.subr.mxu0 0.0
    %1327 = vmatpush1.msra.mxu0 %v35
    %1328 = vmatprep.subr.mxu0 0.0
    %1329 = vmatpush1.msra.mxu0 0.0
    %1330 = vmatprep.subr.mxu0 0.0
    %1331 = vmatpush1.msra.mxu0 0.0
    %1332 = vmatprep.subr.mxu0 0.0
    %1333 = vmatpush1.msra.mxu0 0.0
    %1334 = vmatprep.subr.mxu0 0.0
    %1335 = vmatpush1.msra.mxu0 0.0
    %1336 = vmatprep.subr.mxu0 0.0
    %1337 = vmatpush1.msra.mxu0 0.0
    %1338 = vmatprep.subr.mxu0 0.0
    %1339 = vmatpush1.msra.mxu0 0.0
    %1340 = vmatprep.subr.mxu0 0.0
    %1341 = vmatpush1.msra.mxu0 0.0
    %1342 = vmatprep.subr.mxu0 0.0
    %1343 = vmatpush1.msra.mxu0 0.0
    %1344 = vmatprep.subr.mxu0 0.0
    %1345 = vmatpush1.msra.mxu0 0.0
    %1346 = vmatprep.subr.mxu0 0.0
    %1347 = vmatpush1.msra.mxu0 0.0
    %1348 = vmatprep.subr.mxu0 0.0
    %1349 = vmatpush1.msra.mxu0 0.0
    %1350 = vmatprep.subr.mxu0 0.0
    %1351 = vmatpush1.msra.mxu0 0.0
    %1352 = vmatprep.subr.mxu0 0.0
    %1353 = vmatpush1.msra.mxu0 0.0
    %1354 = vmatprep.subr.mxu0 0.0
    %1355 = vmatpush1.msra.mxu0 0.0
    %1356 = vmatprep.subr.mxu0 0.0
    %1357 = vmatpush1.msra.mxu0 0.0
    %1358 = vmatprep.subr.mxu0 0.0
    %1359 = vmatpush1.msra.mxu0 0.0
    %1360 = vmatprep.subr.mxu0 0.0
    %1361 = vmatpush1.msra.mxu0 0.0
    %1362 = vmatprep.subr.mxu0 0.0
    %1363 = vmatpush1.msra.mxu0 0.0
    %1364 = vmatprep.subr.mxu0 0.0
    %1365 = vmatpush1.msra.mxu0 0.0
    %1366 = vmatprep.subr.mxu0 0.0
    %1367 = vmatpush1.msra.mxu0 0.0
    %1368 = vmatprep.subr.mxu0 0.0
    %1369 = vmatpush1.msra.mxu0 0.0
    %1370 = vmatprep.subr.mxu0 0.0
    %1371 = vmatpush1.msra.mxu0 0.0
    %1372 = vmatprep.subr.mxu0 0.0
    %1373 = vmatpush1.msra.mxu0 0.0
    %1374 = vmatprep.subr.mxu0 0.0
    %1375 = vmatpush1.msra.mxu0 0.0
    %1376 = vmatprep.mubr.f32.mxu0 0.0
    %1377 = vmatmul.mubr.f32.gmra.mrb[0].mxu0 %v1217
    %v1378 = vpop.f32.mrb[0].mxu0
    %v1379 = vadd.f32 %v437, %v1378
    %v1380 = vpop.f32.mrb[0].mxu0
    %1381 = vmatprep.mubr.f32.mxu0 0.0
    %1382 = vmatmul.mubr.f32.gmra.mrb[0].mxu0 %v1220
    %v1383 = vpop.f32.mrb[0].mxu0
    %v1384 = vadd.f32 %v437, %v1383
    %v1385 = vpop.f32.mrb[0].mxu0
    %1386 = vmatprep.mubr.f32.mxu0 0.0
    %1387 = vmatmul.mubr.f32.gmra.mrb[0].mxu0 %v1223
    %v1388 = vpop.f32.mrb[0].mxu0
    %v1389 = vadd.f32 %v437, %v1388
    %v1390 = vpop.f32.mrb[0].mxu0
    %1391 = vmatprep.mubr.f32.mxu0 0.0
    %1392 = vmatmul.mubr.f32.gmra.mrb[0].mxu0 %v1226
    %v1393 = vpop.f32.mrb[0].mxu0
    %v1394 = vadd.f32 %v437, %v1393
    %v1395 = vpop.f32.mrb[0].mxu0
    %1396 = vmatprep.mubr.f32.mxu0 0.0
    %1397 = vmatmul.mubr.f32.gmra.mrb[0].mxu0 %v1229
    %v1398 = vpop.f32.mrb[0].mxu0
    %v1399 = vadd.f32 %v437, %v1398
    %v1400 = vpop.f32.mrb[0].mxu0
    %1401 = vmatprep.mubr.f32.mxu0 0.0
    %1402 = vmatmul.mubr.f32.gmra.mrb[0].mxu0 %v1232
    %v1403 = vpop.f32.mrb[0].mxu0
    %v1404 = vadd.f32 %v437, %v1403
    %v1405 = vpop.f32.mrb[0].mxu0
    %1406 = vmatprep.mubr.f32.mxu0 0.0
    %1407 = vmatmul.mubr.f32.gmra.mrb[0].mxu0 %v1235
    %v1408 = vpop.f32.mrb[0].mxu0
    %v1409 = vadd.f32 %v437, %v1408
    %v1410 = vpop.f32.mrb[0].mxu0
    %1411 = vmatprep.mubr.f32.mxu0 0.0
    %1412 = vmatmul.mubr.f32.gmra.mrb[0].mxu0 %v1238
    %v1413 = vpop.f32.mrb[0].mxu0
    %v1414 = vadd.f32 %v437, %v1413
    %v1415 = vpop.f32.mrb[0].mxu0
    %1416 = vmatprep.mubr.f32.mxu0 0.0
    %1417 = vmatmul.mubr.f32.gmra.mrb[0].mxu0 %v1241
    %v1418 = vpop.f32.mrb[0].mxu0
    %v1419 = vadd.f32 %v437, %v1418
    %v1420 = vpop.f32.mrb[0].mxu0
    %1421 = vmatprep.mubr.f32.mxu0 0.0
    %1422 = vmatmul.mubr.f32.gmra.mrb[0].mxu0 %v1244
    %v1423 = vpop.f32.mrb[0].mxu0
    %v1424 = vadd.f32 %v437, %v1423
    %v1425 = vpop.f32.mrb[0].mxu0
    %1426 = vmatprep.mubr.f32.mxu0 0.0
    %1427 = vmatmul.mubr.f32.gmra.mrb[0].mxu0 %v1247
    %v1428 = vpop.f32.mrb[0].mxu0
    %v1429 = vadd.f32 %v437, %v1428
    %v1430 = vpop.f32.mrb[0].mxu0
    %1431 = vmatprep.mubr.f32.mxu0 0.0
    %1432 = vmatmul.mubr.f32.gmra.mrb[0].mxu0 %v1250
    %v1433 = vpop.f32.mrb[0].mxu0
    %v1434 = vadd.f32 %v437, %v1433
    %v1435 = vpop.f32.mrb[0].mxu0
    %1436 = vmatprep.mubr.f32.mxu0 0.0
    %1437 = vmatmul.mubr.f32.gmra.mrb[0].mxu0 %v1253
    %v1438 = vpop.f32.mrb[0].mxu0
    %v1439 = vadd.f32 %v437, %v1438
    %v1440 = vpop.f32.mrb[0].mxu0
    %1441 = vmatprep.mubr.f32.mxu0 0.0
    %1442 = vmatmul.mubr.f32.gmra.mrb[0].mxu0 %v1256
    %v1443 = vpop.f32.mrb[0].mxu0
    %v1444 = vadd.f32 %v437, %v1443
    %v1445 = vpop.f32.mrb[0].mxu0
    %1446 = vmatprep.mubr.f32.mxu0 0.0
    %1447 = vmatmul.mubr.f32.gmra.mrb[0].mxu0 %v1259
    %v1448 = vpop.f32.mrb[0].mxu0
    %v1449 = vadd.f32 %v437, %v1448
    %v1450 = vpop.f32.mrb[0].mxu0
    %1451 = vmatprep.mubr.f32.mxu0 0.0
    %1452 = vmatmul.mubr.f32.gmra.mrb[0].mxu0 %v1262
    %v1453 = vpop.f32.mrb[0].mxu0
    %v1454 = vadd.f32 %v437, %v1453
    %v1455 = vpop.f32.mrb[0].mxu0
    %1456 = vmatprep.mubr.f32.mxu0 0.0
    %1457 = vmatmul.mubr.f32.gmra.mrb[0].mxu0 %v1265
    %v1458 = vpop.f32.mrb[0].mxu0
    %v1459 = vadd.f32 %v437, %v1458
    %v1460 = vpop.f32.mrb[0].mxu0
    %1461 = vmatprep.mubr.f32.mxu0 0.0
    %1462 = vmatmul.mubr.f32.gmra.mrb[0].mxu0 %v1268
    %v1463 = vpop.f32.mrb[0].mxu0
    %v1464 = vadd.f32 %v437, %v1463
    %v1465 = vpop.f32.mrb[0].mxu0
    %1466 = vmatprep.mubr.f32.mxu0 0.0
    %1467 = vmatmul.mubr.f32.gmra.mrb[0].mxu0 %v1271
    %v1468 = vpop.f32.mrb[0].mxu0
    %v1469 = vadd.f32 %v437, %v1468
    %v1470 = vpop.f32.mrb[0].mxu0
    %1471 = vmatprep.mubr.f32.mxu0 0.0
    %1472 = vmatmul.mubr.f32.gmra.mrb[0].mxu0 %v1274
    %v1473 = vpop.f32.mrb[0].mxu0
    %v1474 = vadd.f32 %v437, %v1473
    %v1475 = vpop.f32.mrb[0].mxu0
    %1476 = vmatprep.mubr.f32.mxu0 0.0
    %1477 = vmatmul.mubr.f32.gmra.mrb[0].mxu0 %v1277
    %v1478 = vpop.f32.mrb[0].mxu0
    %v1479 = vadd.f32 %v437, %v1478
    %v1480 = vpop.f32.mrb[0].mxu0
    %1481 = vmatprep.mubr.f32.mxu0 0.0
    %1482 = vmatmul.mubr.f32.gmra.mrb[0].mxu0 %v1280
    %v1483 = vpop.f32.mrb[0].mxu0
    %v1484 = vadd.f32 %v437, %v1483
    %v1485 = vpop.f32.mrb[0].mxu0
    %1486 = vmatprep.mubr.f32.mxu0 0.0
    %1487 = vmatmul.mubr.f32.gmra.mrb[0].mxu0 %v1283
    %v1488 = vpop.f32.mrb[0].mxu0
    %v1489 = vadd.f32 %v437, %v1488
    %v1490 = vpop.f32.mrb[0].mxu0
    %1491 = vmatprep.mubr.f32.mxu0 0.0
    %1492 = vmatmul.mubr.f32.gmra.mrb[0].mxu0 %v1286
    %v1493 = vpop.f32.mrb[0].mxu0
    %v1494 = vadd.f32 %v437, %v1493
    %v1495 = vpop.f32.mrb[0].mxu0
    %1496 = vmatprep.mubr.f32.mxu0 0.0
    %1497 = vmatmul.mubr.f32.gmra.mrb[0].mxu0 %v1289
    %v1498 = vpop.f32.mrb[0].mxu0
    %v1499 = vadd.f32 %v437, %v1498
    %v1500 = vpop.f32.mrb[0].mxu0
    %1501 = vmatprep.mubr.f32.mxu0 0.0
    %1502 = vmatmul.mubr.f32.gmra.mrb[0].mxu0 %v1292
    %v1503 = vpop.f32.mrb[0].mxu0
    %v1504 = vadd.f32 %v437, %v1503
    %v1505 = vpop.f32.mrb[0].mxu0
    %1506 = vmatprep.mubr.f32.mxu0 0.0
    %1507 = vmatmul.mubr.f32.gmra.mrb[0].mxu0 %v1295
    %v1508 = vpop.f32.mrb[0].mxu0
    %v1509 = vadd.f32 %v437, %v1508
    %v1510 = vpop.f32.mrb[0].mxu0
    %1511 = vmatprep.mubr.f32.mxu0 0.0
    %1512 = vmatmul.mubr.f32.gmra.mrb[0].mxu0 %v1298
    %v1513 = vpop.f32.mrb[0].mxu0
    %v1514 = vadd.f32 %v437, %v1513
    %v1515 = vpop.f32.mrb[0].mxu0
    %1516 = vmatprep.mubr.f32.mxu0 0.0
    %1517 = vmatmul.mubr.f32.gmra.mrb[0].mxu0 %v1301
    %v1518 = vpop.f32.mrb[0].mxu0
    %v1519 = vadd.f32 %v437, %v1518
    %v1520 = vpop.f32.mrb[0].mxu0
    %1521 = vmatprep.mubr.f32.mxu0 0.0
    %1522 = vmatmul.mubr.f32.gmra.mrb[0].mxu0 %v1304
    %v1523 = vpop.f32.mrb[0].mxu0
    %v1524 = vadd.f32 %v437, %v1523
    %v1525 = vpop.f32.mrb[0].mxu0
    %1526 = vmatprep.mubr.f32.mxu0 0.0
    %1527 = vmatmul.mubr.f32.gmra.mrb[0].mxu0 %v1307
    %v1528 = vpop.f32.mrb[0].mxu0
    %v1529 = vadd.f32 %v437, %v1528
    %v1530 = vpop.f32.mrb[0].mxu0
    %1531 = vmatprep.mubr.f32.mxu0 0.0
    %1532 = vmatmul.mubr.f32.gmra.mrb[0].mxu0 %v1310
    %v1533 = vpop.f32.mrb[0].mxu0
    %v1534 = vadd.f32 %v437, %v1533
    %v1535 = vpop.f32.mrb[0].mxu0
    %1536 = vdwg.mxu0
    %v1537 = vmax.f32 %v1379, 0.0
    %v1538 = vmax.f32 %v1384, 0.0
    %v1539 = vmax.f32 %v1389, 0.0
    %v1540 = vmax.f32 %v1394, 0.0
    %v1541 = vmax.f32 %v1399, 0.0
    %v1542 = vmax.f32 %v1404, 0.0
    %v1543 = vmax.f32 %v1409, 0.0
    %v1544 = vmax.f32 %v1414, 0.0
    %v1545 = vmax.f32 %v1419, 0.0
    %v1546 = vmax.f32 %v1424, 0.0
    %v1547 = vmax.f32 %v1429, 0.0
    %v1548 = vmax.f32 %v1434, 0.0
    %v1549 = vmax.f32 %v1439, 0.0
    %v1550 = vmax.f32 %v1444, 0.0
    %v1551 = vmax.f32 %v1449, 0.0
    %v1552 = vmax.f32 %v1454, 0.0
    %v1553 = vmax.f32 %v1459, 0.0
    %v1554 = vmax.f32 %v1464, 0.0
    %v1555 = vmax.f32 %v1469, 0.0
    %v1556 = vmax.f32 %v1474, 0.0
    %v1557 = vmax.f32 %v1479, 0.0
    %v1558 = vmax.f32 %v1484, 0.0
    %v1559 = vmax.f32 %v1489, 0.0
    %v1560 = vmax.f32 %v1494, 0.0
    %v1561 = vmax.f32 %v1499, 0.0
    %v1562 = vmax.f32 %v1504, 0.0
    %v1563 = vmax.f32 %v1509, 0.0
    %v1564 = vmax.f32 %v1514, 0.0
    %v1565 = vmax.f32 %v1519, 0.0
    %v1566 = vmax.f32 %v1524, 0.0
    %v1567 = vmax.f32 %v1529, 0.0
    %v1568 = vmax.f32 %v1534, 0.0
    %v1569 = vmax.f32 %v1537, %v1541
    %v1570 = vmax.f32 %v1538, %v1542
    %v1571 = vmax.f32 %v1539, %v1543
    %v1572 = vmax.f32 %v1540, %v1544
    %v1573 = vmax.f32 %v1569, %v1545
    %v1574 = vmax.f32 %v1570, %v1546
    %v1575 = vmax.f32 %v1571, %v1547
    %v1576 = vmax.f32 %v1572, %v1548
    %v1577 = vmax.f32 %v1573, %v1549
    %v1578 = vmax.f32 %v1574, %v1550
    %v1579 = vmax.f32 %v1575, %v1551
    %v1580 = vmax.f32 %v1576, %v1552
    %v1581 = vmax.f32 %v1577, %v1553
    %v1582 = vmax.f32 %v1578, %v1554
    %v1583 = vmax.f32 %v1579, %v1555
    %v1584 = vmax.f32 %v1580, %v1556
    %v1585 = vmax.f32 %v1581, %v1557
    %v1586 = vmax.f32 %v1582, %v1558
    %v1587 = vmax.f32 %v1583, %v1559
    %v1588 = vmax.f32 %v1584, %v1560
    %v1589 = vmax.f32 %v1585, %v1561
    %v1590 = vmax.f32 %v1586, %v1562
    %v1591 = vmax.f32 %v1587, %v1563
    %v1592 = vmax.f32 %v1588, %v1564
    %v1593 = vmax.f32 %v1589, %v1565
    %v1594 = vmax.f32 %v1590, %v1566
    %v1595 = vmax.f32 %v1591, %v1567
    %v1596 = vmax.f32 %v1592, %v1568
    %v1597 = vmax.f32 %v1593, %v1594
    %v1598 = vmax.f32 %v1595, %v1596
    %v1599 = vmax.f32 %v1597, %v1598
    %v1600 = vrot.slane %v1599, 4
    %v1601 = vmax.f32 %v1599, %v1600
    %v1602 = vrot.slane %v1601, 2
    %v1603 = vmax.f32 %v1601, %v1602
    %v1604 = vrot.slane %v1603, 1
    %v1605 = vmax.f32 %v1603, %v1604
    %vm1606 = vcmask 1040384
    %v1607 = vsel %vm1606, %v829, %v1605
    %v1608 = vld [vmem:[#allocation2] sm:$0x3]
    %v1609 = vmax.f32 %v1608, %v1607
    %1610 = vst [vmem:[#allocation2] sm:$0x3] %v1609
    // Predicated region
    $region26: #{tpu_custom_call.1} parent=1 // pred_check
      _
    $region27: #{tpu_custom_call.1} parent=1 // pred_check_branch
      %1612 = sbr.rel (0) target = $region29
    $region28: #{tpu_custom_call.1} parent=1 // pred_region
      %s1614 = ssub.s32 32, 32
      %1615 = vsyncadd [#allocation3], %s1614
      %s1617 = sshll.u32 [#allocation2], 4
      %s1618 = int_to_ptr.vmem [resolvable:$true] %s1617
      %1620 = dma.vmem_to_hbm [thread:$0]  %s1618, 32, %s5, [#allocation3]
    $region29: #{tpu_custom_call.1} parent=1 // pred_fallthru
      _
    // Predicated region
    $region30: #{tpu_custom_call.1} parent=1 // pred_check
      _
    $region31: #{tpu_custom_call.1} parent=1 // pred_check_branch
      %1622 = sbr.rel (0) target = $region33
    $region32: #{tpu_custom_call.1} parent=1 // pred_region
      %1623 = dma.done [#allocation3], 32
    $region33: #{tpu_custom_call.1} parent=1 // pred_fallthru
      _
    %1624 = vsyncpa [#allocation3], 1

</llo_original>
